<compile_context>
chip_gen: v6e
topology: v6e:2x2x1
jax: 0.10.0
libtpu: 0.0.40
codegen_flags: <defaults>
</compile_context>

<pallas_src>
import jax
import jax.numpy as jnp
import numpy as np
from jax import lax
from jax.experimental import pallas as pl
from jax.experimental.pallas import tpu as pltpu

# ---------------- model hyperparameters (small, forward-consistent) ----------
N_HEAD = 4
DIM_MODEL = 32
D_K = 8
D_V = 8
EPS = 1e-6


# ---------------- Pallas kernel ----------------------------------------------
def mha_kernel(q_ref, k_ref, v_ref,
               wq_ref, wk_ref, wv_ref, wfc_ref,
               gamma_ref, beta_ref,
               out_ref):
    # One (batch, query-tile) per grid step.
    xq = q_ref[0]                       # (TQ, Dm)
    xk = k_ref[0]                       # (Lk, Dm)
    xv = v_ref[0]                       # (Lv, Dm)

    n_head, dm, d_k = wq_ref.shape
    tq = xq.shape[0]
    lk = xk.shape[0]
    lv = xv.shape[0]
    inv_scale = 1.0 / (float(d_k) ** 0.5)

    # All heads at once: broadcast the activation across the head axis (vreg
    # only, no extra HBM traffic) and use canonical batch-leading einsums.
    # No per-head Python loop, no width-d_k lane slicing of Q/K/V.
    xqh = jnp.broadcast_to(xq[None], (n_head, tq, dm))
    xkh = jnp.broadcast_to(xk[None], (n_head, lk, dm))
    xvh = jnp.broadcast_to(xv[None], (n_head, lv, dm))

    qh = jnp.einsum('hlm,hmd->hld', xqh, wq_ref[...],
                    preferred_element_type=jnp.float32)          # (H, TQ, dk)
    kh = jnp.einsum('hlm,hmd->hld', xkh, wk_ref[...],
                    preferred_element_type=jnp.float32)          # (H, Lk, dk)
    vh = jnp.einsum('hlm,hmd->hld', xvh, wv_ref[...],
                    preferred_element_type=jnp.float32)          # (H, Lv, dv)

    # Scaled dot-product attention for all heads in a single batched op each.
    s = jnp.einsum('hqd,hkd->hqk', qh, kh,
                   preferred_element_type=jnp.float32) * inv_scale   # (H, TQ, Lk)
    # NOTE: mask intentionally omitted (reference's masked_fill result is
    # discarded); dropout is identity in eval mode.
    s = s - jnp.max(s, axis=-1, keepdims=True)
    p = jnp.exp(s)
    p = p * pl.reciprocal(jnp.sum(p, axis=-1, keepdims=True), approx=False)
    o = jnp.einsum('hqk,hkd->hqd', p, vh,
                   preferred_element_type=jnp.float32)           # (H, TQ, dv)

    # Fused output projection: per-head (dv, Dm) weight slabs, then a cheap
    # reduction over the leading head axis; residual uses the un-projected q.
    y = jnp.sum(jnp.einsum('hqd,hdm->hqm', o, wfc_ref[...],
                           preferred_element_type=jnp.float32),
                axis=0) + xq                                     # (TQ, Dm)

    # LayerNorm over features: single-pass stats (biased variance), affine.
    mean = jnp.mean(y, axis=-1, keepdims=True)
    var = jnp.mean(y * y, axis=-1, keepdims=True) - mean * mean
    normed = (y - mean) * lax.rsqrt(var + EPS)
    # TODO(synk): for large B*L on v5e, repack 4 rows/vreg into a lane-dense
    # ((rows*Dm)/128, 128) output slab; at Dm=32 toy sizes the masked store is
    # negligible so the natural (B, Lq, Dm) layout is kept.
    out_ref[0] = normed * gamma_ref[...] + beta_ref[...]


# ---------------- wrapper -----------------------------------------------------
def multi_head_attention(q, k, v, params):
    """q, k, v: (B, L*, dim_model) float32. Returns (B, Lq, dim_model)."""
    B, Lq, Dm = q.shape
    _, Lk, _ = k.shape
    _, Lv, _ = v.shape
    wq, wk, wv, wfc, gamma, beta = params

    # One-time XLA-side weight relayout to per-head (in, out) slabs so the
    # kernel needs no in-kernel transposes and no lane slicing.
    wq3 = wq.reshape(N_HEAD, D_K, Dm).transpose(0, 2, 1)   # (H, Dm, dk)
    wk3 = wk.reshape(N_HEAD, D_K, Dm).transpose(0, 2, 1)   # (H, Dm, dk)
    wv3 = wv.reshape(N_HEAD, D_V, Dm).transpose(0, 2, 1)   # (H, Dm, dv)
    wfc3 = wfc.T.reshape(N_HEAD, D_V, Dm)                  # (H, dv, Dm)

    # Query-row tile so the kernel scales past toy sizes without blowing VMEM
    # (re-derived for v7x's 64 MiB budget via the explicit vmem limit below).
    # K/V + weights stay resident across query tiles (constant index_map on t).
    TQ = Lq if Lq <= 256 else 256
    grid = (B, pl.cdiv(Lq, TQ))

    # Advisory cost estimate so XLA schedules/overlaps around the custom call.
    flops = (2 * B * N_HEAD * Dm * D_K * (Lq + Lk)        # Q, K projections
             + 2 * B * N_HEAD * Dm * D_V * Lv             # V projection
             + 2 * B * N_HEAD * Lq * Lk * (D_K + D_V)     # Q K^T and P V
             + 2 * B * N_HEAD * Lq * D_V * Dm)            # fused fc
    bytes_accessed = 4 * (q.size + k.size + v.size + wq3.size + wk3.size
                          + wv3.size + wfc3.size + gamma.size + beta.size
                          + B * Lq * Dm)
    cost = pl.CostEstimate(flops=int(flops),
                           transcendentals=int(B * N_HEAD * Lq * Lk),
                           bytes_accessed=int(bytes_accessed))

    out = pl.pallas_call(
        mha_kernel,
        out_shape=jax.ShapeDtypeStruct((B, Lq, Dm), jnp.float32),
        grid_spec=pltpu.PrefetchScalarGridSpec(
            num_scalar_prefetch=0,
            grid=grid,
            in_specs=[
                pl.BlockSpec((1, TQ, Dm), lambda b, t: (b, t, 0)),   # q tile
                pl.BlockSpec((1, Lk, Dm), lambda b, t: (b, 0, 0)),   # k (whole per batch)
                pl.BlockSpec((1, Lv, Dm), lambda b, t: (b, 0, 0)),   # v (whole per batch)
                pl.BlockSpec(wq3.shape, lambda b, t: (0, 0, 0)),     # resident weights
                pl.BlockSpec(wk3.shape, lambda b, t: (0, 0, 0)),
                pl.BlockSpec(wv3.shape, lambda b, t: (0, 0, 0)),
                pl.BlockSpec(wfc3.shape, lambda b, t: (0, 0, 0)),
                pl.BlockSpec(gamma.shape, lambda b, t: (0, 0)),
                pl.BlockSpec(beta.shape, lambda b, t: (0, 0)),
            ],
            out_specs=pl.BlockSpec((1, TQ, Dm), lambda b, t: (b, t, 0)),
        ),
        compiler_params=pltpu.CompilerParams(
            dimension_semantics=("parallel", "parallel"),
            vmem_limit_bytes=32 * 1024 * 1024,
        ),
        cost_estimate=cost,
    )(q, k, v, wq3, wk3, wv3, wfc3, gamma, beta)
    return out


# ---------------- pure-JAX reference (for verification) ----------------------
def reference(q, k, v, params):
    wq, wk, wv, wfc, gamma, beta = params
    B, Lq, Dm = q.shape
    scale = float(D_K) ** 0.5
    residual = q
    Q = (q @ wq.T).reshape(B, Lq, N_HEAD, D_K).transpose(0, 2, 1, 3)
    K = (k @ wk.T).reshape(B, k.shape[1], N_HEAD, D_K).transpose(0, 2, 1, 3)
    V = (v @ wv.T).reshape(B, v.shape[1], N_HEAD, D_V).transpose(0, 2, 1, 3)
    S = jnp.einsum("bhqd,bhkd->bhqk", Q, K) / scale
    P = jax.nn.softmax(S, axis=-1)
    O = jnp.einsum("bhqk,bhkd->bhqd", P, V)
    O = O.transpose(0, 2, 1, 3).reshape(B, Lq, N_HEAD * D_V)
    out = O @ wfc.T + residual
    mean = jnp.mean(out, axis=-1, keepdims=True)
    var = jnp.mean((out - mean) ** 2, axis=-1, keepdims=True)
    return (out - mean) * lax.rsqrt(var + EPS) * gamma[0] + beta[0]


# ---------------- main --------------------------------------------------------
if __name__ == "__main__":
    key = jax.random.PRNGKey(0)
    k_q, k_k, k_v, k_wq, k_wk, k_wv, k_fc = jax.random.split(key, 7)

    B, L = 2, 8
    q = jax.random.normal(k_q, (B, L, DIM_MODEL), dtype=jnp.float32)
    k = jax.random.normal(k_k, (B, L, DIM_MODEL), dtype=jnp.float32)
    v = jax.random.normal(k_v, (B, L, DIM_MODEL), dtype=jnp.float32)

    # Deterministic parameter init (PyTorch-style (out, in) weight layout).
    def init_linear(rng, out_f, in_f):
        bound = 1.0 / np.sqrt(in_f)
        return jax.random.uniform(rng, (out_f, in_f), jnp.float32, -bound, bound)

    wq = init_linear(k_wq, N_HEAD * D_K, DIM_MODEL)
    wk = init_linear(k_wk, N_HEAD * D_K, DIM_MODEL)
    wv = init_linear(k_wv, N_HEAD * D_V, DIM_MODEL)
    wfc = init_linear(k_fc, DIM_MODEL, N_HEAD * D_V)
    gamma = jnp.ones((1, DIM_MODEL), jnp.float32)
    beta = jnp.zeros((1, DIM_MODEL), jnp.float32)
    params = (wq, wk, wv, wfc, gamma, beta)

    out = multi_head_attention(q, k, v, params)
    out = jax.block_until_ready(out)

    ref = jax.block_until_ready(reference(q, k, v, params))
    np.testing.assert_allclose(np.asarray(out), np.asarray(ref),
                               rtol=1e-3, atol=1e-3)
    print("KERNEL_OK")
</pallas_src>

<mosaic_0001>
module attributes {stable_mosaic.version = 11 : i64} {
  func.func @mha_kernel(%arg0: i32, %arg1: i32, %arg2: memref<1x8x32xf32, #tpu.memory_space<vmem>>, %arg3: memref<1x8x32xf32, #tpu.memory_space<vmem>>, %arg4: memref<1x8x32xf32, #tpu.memory_space<vmem>>, %arg5: memref<4x32x8xf32, #tpu.memory_space<vmem>>, %arg6: memref<4x32x8xf32, #tpu.memory_space<vmem>>, %arg7: memref<4x32x8xf32, #tpu.memory_space<vmem>>, %arg8: memref<4x8x32xf32, #tpu.memory_space<vmem>>, %arg9: memref<1x32xf32, #tpu.memory_space<vmem>>, %arg10: memref<1x32xf32, #tpu.memory_space<vmem>>, %arg11: memref<1x8x32xf32, #tpu.memory_space<vmem>>) attributes {dimension_semantics = [#tpu.dimension_semantics<parallel>, #tpu.dimension_semantics<parallel>], iteration_bounds = array<i64: 2, 1>, scalar_prefetch = 0 : i64, scratch_operands = 0 : i64, tpu.core_type = #tpu.core_type<tc>, window_params = [{transform_indices = @transform_0, window_bounds = array<i64: 1, 8, 32>}, {transform_indices = @transform_1, window_bounds = array<i64: 1, 8, 32>}, {transform_indices = @transform_2, window_bounds = array<i64: 1, 8, 32>}, {pipeline_mode = #tpu.pipeline_mode<synchronous>, transform_indices = @transform_3, window_bounds = array<i64: 4, 32, 8>}, {pipeline_mode = #tpu.pipeline_mode<synchronous>, transform_indices = @transform_4, window_bounds = array<i64: 4, 32, 8>}, {pipeline_mode = #tpu.pipeline_mode<synchronous>, transform_indices = @transform_5, window_bounds = array<i64: 4, 32, 8>}, {pipeline_mode = #tpu.pipeline_mode<synchronous>, transform_indices = @transform_6, window_bounds = array<i64: 4, 8, 32>}, {pipeline_mode = #tpu.pipeline_mode<synchronous>, transform_indices = @transform_7, window_bounds = array<i64: 1, 32>}, {pipeline_mode = #tpu.pipeline_mode<synchronous>, transform_indices = @transform_8, window_bounds = array<i64: 1, 32>}, {transform_indices = @transform_9, window_bounds = array<i64: 1, 8, 32>}]} {
    %c0 = arith.constant 0 : index
    %c0_0 = arith.constant 0 : index
    %c0_1 = arith.constant 0 : index
    %0 = vector.load %arg2[%c0, %c0_0, %c0_1] : memref<1x8x32xf32, #tpu.memory_space<vmem>>, vector<1x8x32xf32>
    %1 = vector.shape_cast %0 : vector<1x8x32xf32> to vector<8x32xf32>
    %c0_2 = arith.constant 0 : index
    %c0_3 = arith.constant 0 : index
    %c0_4 = arith.constant 0 : index
    %2 = vector.load %arg3[%c0_2, %c0_3, %c0_4] : memref<1x8x32xf32, #tpu.memory_space<vmem>>, vector<1x8x32xf32>
    %3 = vector.shape_cast %2 : vector<1x8x32xf32> to vector<8x32xf32>
    %c0_5 = arith.constant 0 : index
    %c0_6 = arith.constant 0 : index
    %c0_7 = arith.constant 0 : index
    %4 = vector.load %arg4[%c0_5, %c0_6, %c0_7] : memref<1x8x32xf32, #tpu.memory_space<vmem>>, vector<1x8x32xf32>
    %5 = vector.shape_cast %4 : vector<1x8x32xf32> to vector<8x32xf32>
    %6 = vector.shape_cast %1 : vector<8x32xf32> to vector<1x8x32xf32>
    %7 = vector.shape_cast %6 : vector<1x8x32xf32> to vector<1x8x32xf32>
    %8 = vector.broadcast %7 : vector<1x8x32xf32> to vector<4x8x32xf32>
    %9 = vector.shape_cast %3 : vector<8x32xf32> to vector<1x8x32xf32>
    %10 = vector.shape_cast %9 : vector<1x8x32xf32> to vector<1x8x32xf32>
    %11 = vector.broadcast %10 : vector<1x8x32xf32> to vector<4x8x32xf32>
    %12 = vector.shape_cast %5 : vector<8x32xf32> to vector<1x8x32xf32>
    %13 = vector.shape_cast %12 : vector<1x8x32xf32> to vector<1x8x32xf32>
    %14 = vector.broadcast %13 : vector<1x8x32xf32> to vector<4x8x32xf32>
    %c0_8 = arith.constant 0 : index
    %c0_9 = arith.constant 0 : index
    %c0_10 = arith.constant 0 : index
    %15 = vector.load %arg5[%c0_8, %c0_9, %c0_10] : memref<4x32x8xf32, #tpu.memory_space<vmem>>, vector<4x32x8xf32>
    "tpu.trace_start"() <{level = 10 : i32, message = "hlm,hmd->hld"}> : () -> ()
    %cst = arith.constant dense<0.000000e+00> : vector<4x8x8xf32>
    %16 = tpu.matmul %8, %15, %cst {dimension_numbers = #tpu.dot_dimension_numbers<[2], [1], [1], [2], [0, 0, 0, 1, 1, 2], [0], [0]>} : vector<4x8x32xf32>, vector<4x32x8xf32>, vector<4x8x8xf32> -> vector<4x8x8xf32>
    "tpu.trace_stop"() : () -> ()
    %c0_11 = arith.constant 0 : index
    %c0_12 = arith.constant 0 : index
    %c0_13 = arith.constant 0 : index
    %17 = vector.load %arg6[%c0_11, %c0_12, %c0_13] : memref<4x32x8xf32, #tpu.memory_space<vmem>>, vector<4x32x8xf32>
    "tpu.trace_start"() <{level = 10 : i32, message = "hlm,hmd->hld"}> : () -> ()
    %cst_14 = arith.constant dense<0.000000e+00> : vector<4x8x8xf32>
    %18 = tpu.matmul %11, %17, %cst_14 {dimension_numbers = #tpu.dot_dimension_numbers<[2], [1], [1], [2], [0, 0, 0, 1, 1, 2], [0], [0]>} : vector<4x8x32xf32>, vector<4x32x8xf32>, vector<4x8x8xf32> -> vector<4x8x8xf32>
    "tpu.trace_stop"() : () -> ()
    %c0_15 = arith.constant 0 : index
    %c0_16 = arith.constant 0 : index
    %c0_17 = arith.constant 0 : index
    %19 = vector.load %arg7[%c0_15, %c0_16, %c0_17] : memref<4x32x8xf32, #tpu.memory_space<vmem>>, vector<4x32x8xf32>
    "tpu.trace_start"() <{level = 10 : i32, message = "hlm,hmd->hld"}> : () -> ()
    %cst_18 = arith.constant dense<0.000000e+00> : vector<4x8x8xf32>
    %20 = tpu.matmul %14, %19, %cst_18 {dimension_numbers = #tpu.dot_dimension_numbers<[2], [1], [1], [2], [0, 0, 0, 1, 1, 2], [0], [0]>} : vector<4x8x32xf32>, vector<4x32x8xf32>, vector<4x8x8xf32> -> vector<4x8x8xf32>
    "tpu.trace_stop"() : () -> ()
    "tpu.trace_start"() <{level = 10 : i32, message = "hqd,hkd->hqk"}> : () -> ()
    %cst_19 = arith.constant dense<0.000000e+00> : vector<4x8x8xf32>
    %21 = tpu.matmul %16, %18, %cst_19 {dimension_numbers = #tpu.dot_dimension_numbers<[2], [2], [1], [1], [0, 0, 0, 1, 1, 1], [0], [0]>} : vector<4x8x8xf32>, vector<4x8x8xf32>, vector<4x8x8xf32> -> vector<4x8x8xf32>
    "tpu.trace_stop"() : () -> ()
    %cst_20 = arith.constant 0.353553385 : f32
    %22 = vector.broadcast %cst_20 : f32 to vector<4x8x8xf32>
    %23 = arith.mulf %21, %22 : vector<4x8x8xf32>
    %cst_21 = arith.constant dense<0xFF800000> : vector<4x8xf32>
    %24 = vector.multi_reduction <maximumf>, %23, %cst_21 [2] : vector<4x8x8xf32> to vector<4x8xf32>
    %25 = vector.shape_cast %24 : vector<4x8xf32> to vector<4x8x1xf32>
    %26 = vector.broadcast %25 : vector<4x8x1xf32> to vector<4x8x8xf32>
    %27 = arith.subf %23, %26 : vector<4x8x8xf32>
    %28 = math.exp %27 : vector<4x8x8xf32>
    %cst_22 = arith.constant dense<0.000000e+00> : vector<4x8xf32>
    %29 = vector.multi_reduction <add>, %28, %cst_22 [2] : vector<4x8x8xf32> to vector<4x8xf32>
    %30 = vector.shape_cast %29 : vector<4x8xf32> to vector<4x8x1xf32>
    %31 = tpu.reciprocal %30 : vector<4x8x1xf32> -> vector<4x8x1xf32>
    %32 = vector.broadcast %31 : vector<4x8x1xf32> to vector<4x8x8xf32>
    %33 = arith.mulf %28, %32 : vector<4x8x8xf32>
    "tpu.trace_start"() <{level = 10 : i32, message = "hqk,hkd->hqd"}> : () -> ()
    %cst_23 = arith.constant dense<0.000000e+00> : vector<4x8x8xf32>
    %34 = tpu.matmul %33, %20, %cst_23 {dimension_numbers = #tpu.dot_dimension_numbers<[2], [1], [1], [2], [0, 0, 0, 1, 1, 2], [0], [0]>} : vector<4x8x8xf32>, vector<4x8x8xf32>, vector<4x8x8xf32> -> vector<4x8x8xf32>
    "tpu.trace_stop"() : () -> ()
    %c0_24 = arith.constant 0 : index
    %c0_25 = arith.constant 0 : index
    %c0_26 = arith.constant 0 : index
    %35 = vector.load %arg8[%c0_24, %c0_25, %c0_26] : memref<4x8x32xf32, #tpu.memory_space<vmem>>, vector<4x8x32xf32>
    "tpu.trace_start"() <{level = 10 : i32, message = "hqd,hdm->hqm"}> : () -> ()
    %cst_27 = arith.constant dense<0.000000e+00> : vector<4x8x32xf32>
    %36 = tpu.matmul %34, %35, %cst_27 {dimension_numbers = #tpu.dot_dimension_numbers<[2], [1], [1], [2], [0, 0, 0, 1, 1, 2], [0], [0]>} : vector<4x8x8xf32>, vector<4x8x32xf32>, vector<4x8x32xf32> -> vector<4x8x32xf32>
    "tpu.trace_stop"() : () -> ()
    %cst_28 = arith.constant dense<0.000000e+00> : vector<8x32xf32>
    %37 = vector.multi_reduction <add>, %36, %cst_28 [0] : vector<4x8x32xf32> to vector<8x32xf32>
    %38 = arith.addf %37, %1 : vector<8x32xf32>
    %cst_29 = arith.constant dense<0.000000e+00> : vector<8xf32>
    %39 = vector.multi_reduction <add>, %38, %cst_29 [1] : vector<8x32xf32> to vector<8xf32>
    %40 = vector.shape_cast %39 : vector<8xf32> to vector<8x1xf32>
    %cst_30 = arith.constant 3.200000e+01 : f32
    %41 = vector.broadcast %cst_30 : f32 to vector<8x1xf32>
    %42 = arith.divf %40, %41 : vector<8x1xf32>
    %43 = arith.mulf %38, %38 : vector<8x32xf32>
    %cst_31 = arith.constant dense<0.000000e+00> : vector<8xf32>
    %44 = vector.multi_reduction <add>, %43, %cst_31 [1] : vector<8x32xf32> to vector<8xf32>
    %45 = vector.shape_cast %44 : vector<8xf32> to vector<8x1xf32>
    %cst_32 = arith.constant 3.200000e+01 : f32
    %46 = vector.broadcast %cst_32 : f32 to vector<8x1xf32>
    %47 = arith.divf %45, %46 : vector<8x1xf32>
    %48 = arith.mulf %42, %42 : vector<8x1xf32>
    %49 = arith.subf %47, %48 : vector<8x1xf32>
    %50 = vector.broadcast %42 : vector<8x1xf32> to vector<8x32xf32>
    %51 = arith.subf %38, %50 : vector<8x32xf32>
    %cst_33 = arith.constant 9.99999997E-7 : f32
    %52 = vector.broadcast %cst_33 : f32 to vector<8x1xf32>
    %53 = arith.addf %49, %52 : vector<8x1xf32>
    %54 = math.rsqrt %53 : vector<8x1xf32>
    %55 = vector.broadcast %54 : vector<8x1xf32> to vector<8x32xf32>
    %56 = arith.mulf %51, %55 : vector<8x32xf32>
    %c0_34 = arith.constant 0 : index
    %c0_35 = arith.constant 0 : index
    %57 = vector.load %arg9[%c0_34, %c0_35] : memref<1x32xf32, #tpu.memory_space<vmem>>, vector<1x32xf32>
    %58 = vector.broadcast %57 : vector<1x32xf32> to vector<8x32xf32>
    %59 = arith.mulf %56, %58 : vector<8x32xf32>
    %c0_36 = arith.constant 0 : index
    %c0_37 = arith.constant 0 : index
    %60 = vector.load %arg10[%c0_36, %c0_37] : memref<1x32xf32, #tpu.memory_space<vmem>>, vector<1x32xf32>
    %61 = vector.broadcast %60 : vector<1x32xf32> to vector<8x32xf32>
    %62 = arith.addf %59, %61 : vector<8x32xf32>
    %c0_38 = arith.constant 0 : index
    %c0_39 = arith.constant 0 : index
    %c0_40 = arith.constant 0 : index
    %63 = vector.load %arg11[%c0_38, %c0_39, %c0_40] : memref<1x8x32xf32, #tpu.memory_space<vmem>>, vector<1x8x32xf32>
    %64 = vector.shape_cast %63 : vector<1x8x32xf32> to vector<8x32xf32>
    %65 = vector.shape_cast %62 : vector<8x32xf32> to vector<1x8x32xf32>
    tpu.vector_store %arg11[%c0_38, %c0_39, %c0_40], %65 {strides = array<i32>} : memref<1x8x32xf32, #tpu.memory_space<vmem>>, vector<1x8x32xf32>,
    return
  }
  func.func @transform_0(%arg0: i32, %arg1: i32) -> (i32, i32, i32) {
    %c0_i32 = arith.constant 0 : i32
    %c0_i32_0 = arith.constant 0 : i32
    return %arg0, %arg1, %c0_i32 : i32, i32, i32
  }
  func.func @transform_1(%arg0: i32, %arg1: i32) -> (i32, i32, i32) {
    %c0_i32 = arith.constant 0 : i32
    %c0_i32_0 = arith.constant 0 : i32
    %c0_i32_1 = arith.constant 0 : i32
    return %arg0, %c0_i32, %c0_i32_0 : i32, i32, i32
  }
  func.func @transform_2(%arg0: i32, %arg1: i32) -> (i32, i32, i32) {
    %c0_i32 = arith.constant 0 : i32
    %c0_i32_0 = arith.constant 0 : i32
    %c0_i32_1 = arith.constant 0 : i32
    return %arg0, %c0_i32, %c0_i32_0 : i32, i32, i32
  }
  func.func @transform_3(%arg0: i32, %arg1: i32) -> (i32, i32, i32) {
    %c0_i32 = arith.constant 0 : i32
    %c0_i32_0 = arith.constant 0 : i32
    %c0_i32_1 = arith.constant 0 : i32
    %c0_i32_2 = arith.constant 0 : i32
    return %c0_i32, %c0_i32_0, %c0_i32_1 : i32, i32, i32
  }
  func.func @transform_4(%arg0: i32, %arg1: i32) -> (i32, i32, i32) {
    %c0_i32 = arith.constant 0 : i32
    %c0_i32_0 = arith.constant 0 : i32
    %c0_i32_1 = arith.constant 0 : i32
    %c0_i32_2 = arith.constant 0 : i32
    return %c0_i32, %c0_i32_0, %c0_i32_1 : i32, i32, i32
  }
  func.func @transform_5(%arg0: i32, %arg1: i32) -> (i32, i32, i32) {
    %c0_i32 = arith.constant 0 : i32
    %c0_i32_0 = arith.constant 0 : i32
    %c0_i32_1 = arith.constant 0 : i32
    %c0_i32_2 = arith.constant 0 : i32
    return %c0_i32, %c0_i32_0, %c0_i32_1 : i32, i32, i32
  }
  func.func @transform_6(%arg0: i32, %arg1: i32) -> (i32, i32, i32) {
    %c0_i32 = arith.constant 0 : i32
    %c0_i32_0 = arith.constant 0 : i32
    %c0_i32_1 = arith.constant 0 : i32
    %c0_i32_2 = arith.constant 0 : i32
    return %c0_i32, %c0_i32_0, %c0_i32_1 : i32, i32, i32
  }
  func.func @transform_7(%arg0: i32, %arg1: i32) -> (i32, i32) {
    %c0_i32 = arith.constant 0 : i32
    %c0_i32_0 = arith.constant 0 : i32
    %c0_i32_1 = arith.constant 0 : i32
    return %c0_i32, %c0_i32_0 : i32, i32
  }
  func.func @transform_8(%arg0: i32, %arg1: i32) -> (i32, i32) {
    %c0_i32 = arith.constant 0 : i32
    %c0_i32_0 = arith.constant 0 : i32
    %c0_i32_1 = arith.constant 0 : i32
    return %c0_i32, %c0_i32_0 : i32, i32
  }
  func.func @transform_9(%arg0: i32, %arg1: i32) -> (i32, i32, i32) {
    %c0_i32 = arith.constant 0 : i32
    %c0_i32_0 = arith.constant 0 : i32
    return %arg0, %arg1, %c0_i32 : i32, i32, i32
  }
}

</mosaic_0001>

<llo_original>
// kernel: tpu_custom_call.1
$region0: #{tpu_custom_call.1}
  #allocation0 [shape = 'u32[]', space=smem, size = 0x4, offset = 0x4, fixed_abs, tag = 'smem constant byte address 0x4 - core index']
  #allocation1 [shape = 'u32[144,128]{1,0:T(1,128)}', space=vmem, size = 0x12000, scoped, tag = 'internal scratch']
  %s0 = inlined_call_operand.vmem [shape: f32[2,8,32], index: 0, kind: input, shape index: {}]
  %s1 = inlined_call_operand.vmem [shape: f32[2,8,32], index: 1, kind: input, shape index: {}]
  %s2 = inlined_call_operand.vmem [shape: f32[2,8,32], index: 2, kind: input, shape index: {}]
  %s3 = inlined_call_operand.vmem [shape: f32[4,32,8], index: 3, kind: input, shape index: {}]
  %s4 = inlined_call_operand.vmem [shape: f32[4,32,8], index: 4, kind: input, shape index: {}]
  %s5 = inlined_call_operand.vmem [shape: f32[4,32,8], index: 5, kind: input, shape index: {}]
  %s6 = inlined_call_operand.vmem [shape: f32[4,8,32], index: 6, kind: input, shape index: {}]
  %s7 = inlined_call_operand.vmem [shape: f32[1,32], index: 7, kind: input, shape index: {}]
  %s8 = inlined_call_operand.vmem [shape: f32[1,32], index: 8, kind: input, shape index: {}]
  %s9 = inlined_call_operand.hbm [shape: f32[2,8,32], index: 9, kind: output, shape index: {}]
  %s10 = sld [smem:[#allocation0]]
  $region69: #{tpu_custom_call.1} parent=0
    _
  %s12 = ssub.s32 1, %s10
  %s13 = scalar_select 0, %s12, %s10
  $region1: #{tpu_custom_call.1} parent=0
    #allocation2 [shape = 'u8[8192]{0}', space=vmem, size = 0x2000, scoped, tag = 'output window, operand 0']
    #allocation3 [shape = 's32[2]{0}', space=sflag, size = 0x8, scoped, tag = 'scoped memory for tpu_custom_call.1']
    %14 = vsyncpa [#allocation3], 0
    %s15 = scalar_lea.sflag [#allocation3], 1
    %16 = vsyncpa %s15, 0
    loop: start=0, step=1, limit=4
    $region2: #{tpu_custom_call.1} parent=1 // loop_pre_header
      _
    $region3: #{tpu_custom_call.1} parent=1 // loop_header
      %s18 = sphi 0, %s22
      %p19 = scmp.ge.s32.totalorder %s18, 4
      %s25 = sphi 0, %s37
      %s26 = sphi 0, %s33
      %s27 = sphi 0, %s25
      %s28 = sphi 0, %s26
      %s29 = sphi 0, %s27
      %s30 = sphi 0, %s28
      %s42 = sphi 0, %s44
      %s45 = sphi 0, %s42
      %s46 = sphi 0, %s45
      %s62 = sphi 0, %s46
      %s68 = sphi 0, %s70
      %s71 = sphi 0, %s68
      %s72 = sphi 0, %s71
      %s88 = sphi 0, %s72
      %s94 = sphi 0, %s96
      %s97 = sphi 0, %s94
      %s98 = sphi 0, %s97
      %s114 = sphi 0, %s98
      %s118 = sphi 0, %s118
      %s120 = sphi 0, %s118
      %s121 = sphi 0, %s120
      %s135 = sphi 0, %s121
      %s139 = sphi 0, %s139
      %s141 = sphi 0, %s139
      %s142 = sphi 0, %s141
      %s156 = sphi 0, %s142
      %s160 = sphi 0, %s160
      %s162 = sphi 0, %s160
      %s163 = sphi 0, %s162
      %s177 = sphi 0, %s163
      %s181 = sphi 0, %s181
      %s183 = sphi 0, %s181
      %s184 = sphi 0, %s183
      %s198 = sphi 0, %s184
      %s202 = sphi 0, %s202
      %s204 = sphi 0, %s202
      %s205 = sphi 0, %s204
      %s219 = sphi 0, %s205
      %s223 = sphi 0, %s223
      %s225 = sphi 0, %s223
      %s226 = sphi 0, %s225
      %s240 = sphi 0, %s226
      %s248 = sphi 0, %s250
      %s251 = sphi 0, %s248
      %s252 = sphi 0, %s251
      %s268 = sphi 0, %s252
    $region4: #{tpu_custom_call.1} parent=1 // loop_header_branch
      %21 = sbr.rel (%p19) target = $region8
    $region5: #{tpu_custom_call.1} parent=1 // loop_body
      %s23 = ssub.s32 %s18, 1
      %s24 = ssub.s32 %s18, 2
      %s31 = sadd.s32 1, %s26
      %p32 = scmp.ge.s32.totalorder %s31, 1
      %s33 = scalar_select %p32, 0, %s31
      %s34 = sadd.s32 1, %s25
      %s35 = scalar_select %p32, %s34, %s25
      %p36 = scmp.ge.s32.totalorder %s35, 2
      %s37 = scalar_select %p36, 0, %s35
      %s38 = ssub.s32 %s25, %s37
      %s39 = ssub.s32 %s26, %s33
      %s40 = sor.u32 %s38, %s39
      %p41 = scmp.eq.s32.totalorder %s40, 0
      %s43 = sadd.s32 %s42, 1
      %s44 = scalar_select %p41, %s42, %s43
      %p47 = pneg %p41
      %p48 = scmp.eq.s32.totalorder %s18, 1
      %p49 = por %p47, %p48
      %p50 = scmp.ne.s32.totalorder %s42, %s45
      %p51 = scmp.eq.s32.totalorder %s18, 0
      %p52 = por %p50, %p51
      %p53 = scmp.ne.s32.totalorder %s42, %s45
      %p54 = scmp.eq.s32.totalorder %s23, 1
      %p55 = por %p53, %p54
      %p56 = scmp.ne.s32.totalorder %s45, %s46
      %p57 = scmp.eq.s32.totalorder %s23, 0
      %p58 = por %p56, %p57
      %p59 = scmp.ne.s32.totalorder %s45, %s46
      %p60 = scmp.eq.s32.totalorder %s24, 1
      %p61 = por %p59, %p60
      %p63 = scmp.ne.s32.totalorder %s46, %s62
      %p64 = scmp.eq.s32.totalorder %s24, 0
      %p65 = por %p63, %p64
      %s66 = ssub.s32 %s25, %s37
      %p67 = scmp.eq.s32.totalorder %s66, 0
      %s69 = sadd.s32 %s68, 1
      %s70 = scalar_select %p67, %s68, %s69
      %p73 = pneg %p67
      %p74 = scmp.eq.s32.totalorder %s18, 1
      %p75 = por %p73, %p74
      %p76 = scmp.ne.s32.totalorder %s68, %s71
      %p77 = scmp.eq.s32.totalorder %s18, 0
      %p78 = por %p76, %p77
      %p79 = scmp.ne.s32.totalorder %s68, %s71
      %p80 = scmp.eq.s32.totalorder %s23, 1
      %p81 = por %p79, %p80
      %p82 = scmp.ne.s32.totalorder %s71, %s72
      %p83 = scmp.eq.s32.totalorder %s23, 0
      %p84 = por %p82, %p83
      %p85 = scmp.ne.s32.totalorder %s71, %s72
      %p86 = scmp.eq.s32.totalorder %s24, 1
      %p87 = por %p85, %p86
      %p89 = scmp.ne.s32.totalorder %s72, %s88
      %p90 = scmp.eq.s32.totalorder %s24, 0
      %p91 = por %p89, %p90
      %s92 = ssub.s32 %s25, %s37
      %p93 = scmp.eq.s32.totalorder %s92, 0
      %s95 = sadd.s32 %s94, 1
      %s96 = scalar_select %p93, %s94, %s95
      %p99 = pneg %p93
      %p100 = scmp.eq.s32.totalorder %s18, 1
      %p101 = por %p99, %p100
      %p102 = scmp.ne.s32.totalorder %s94, %s97
      %p103 = scmp.eq.s32.totalorder %s18, 0
      %p104 = por %p102, %p103
      %p105 = scmp.ne.s32.totalorder %s94, %s97
      %p106 = scmp.eq.s32.totalorder %s23, 1
      %p107 = por %p105, %p106
      %p108 = scmp.ne.s32.totalorder %s97, %s98
      %p109 = scmp.eq.s32.totalorder %s23, 0
      %p110 = por %p108, %p109
      %p111 = scmp.ne.s32.totalorder %s97, %s98
      %p112 = scmp.eq.s32.totalorder %s24, 1
      %p113 = por %p111, %p112
      %p115 = scmp.ne.s32.totalorder %s98, %s114
      %p116 = scmp.eq.s32.totalorder %s24, 0
      %p117 = por %p115, %p116
      %s119 = sadd.s32 %s118, 1
      %p122 = scmp.eq.s32.totalorder %s18, 1
      %p123 = scmp.ne.s32.totalorder %s118, %s120
      %p124 = scmp.eq.s32.totalorder %s18, 0
      %p125 = por %p123, %p124
      %p126 = scmp.ne.s32.totalorder %s118, %s120
      %p127 = scmp.eq.s32.totalorder %s23, 1
      %p128 = por %p126, %p127
      %p129 = scmp.ne.s32.totalorder %s120, %s121
      %p130 = scmp.eq.s32.totalorder %s23, 0
      %p131 = por %p129, %p130
      %p132 = scmp.ne.s32.totalorder %s120, %s121
      %p133 = scmp.eq.s32.totalorder %s24, 1
      %p134 = por %p132, %p133
      %p136 = scmp.ne.s32.totalorder %s121, %s135
      %p137 = scmp.eq.s32.totalorder %s24, 0
      %p138 = por %p136, %p137
      %s140 = sadd.s32 %s139, 1
      %p143 = scmp.eq.s32.totalorder %s18, 1
      %p144 = scmp.ne.s32.totalorder %s139, %s141
      %p145 = scmp.eq.s32.totalorder %s18, 0
      %p146 = por %p144, %p145
      %p147 = scmp.ne.s32.totalorder %s139, %s141
      %p148 = scmp.eq.s32.totalorder %s23, 1
      %p149 = por %p147, %p148
      %p150 = scmp.ne.s32.totalorder %s141, %s142
      %p151 = scmp.eq.s32.totalorder %s23, 0
      %p152 = por %p150, %p151
      %p153 = scmp.ne.s32.totalorder %s141, %s142
      %p154 = scmp.eq.s32.totalorder %s24, 1
      %p155 = por %p153, %p154
      %p157 = scmp.ne.s32.totalorder %s142, %s156
      %p158 = scmp.eq.s32.totalorder %s24, 0
      %p159 = por %p157, %p158
      %s161 = sadd.s32 %s160, 1
      %p164 = scmp.eq.s32.totalorder %s18, 1
      %p165 = scmp.ne.s32.totalorder %s160, %s162
      %p166 = scmp.eq.s32.totalorder %s18, 0
      %p167 = por %p165, %p166
      %p168 = scmp.ne.s32.totalorder %s160, %s162
      %p169 = scmp.eq.s32.totalorder %s23, 1
      %p170 = por %p168, %p169
      %p171 = scmp.ne.s32.totalorder %s162, %s163
      %p172 = scmp.eq.s32.totalorder %s23, 0
      %p173 = por %p171, %p172
      %p174 = scmp.ne.s32.totalorder %s162, %s163
      %p175 = scmp.eq.s32.totalorder %s24, 1
      %p176 = por %p174, %p175
      %p178 = scmp.ne.s32.totalorder %s163, %s177
      %p179 = scmp.eq.s32.totalorder %s24, 0
      %p180 = por %p178, %p179
      %s182 = sadd.s32 %s181, 1
      %p185 = scmp.eq.s32.totalorder %s18, 1
      %p186 = scmp.ne.s32.totalorder %s181, %s183
      %p187 = scmp.eq.s32.totalorder %s18, 0
      %p188 = por %p186, %p187
      %p189 = scmp.ne.s32.totalorder %s181, %s183
      %p190 = scmp.eq.s32.totalorder %s23, 1
      %p191 = por %p189, %p190
      %p192 = scmp.ne.s32.totalorder %s183, %s184
      %p193 = scmp.eq.s32.totalorder %s23, 0
      %p194 = por %p192, %p193
      %p195 = scmp.ne.s32.totalorder %s183, %s184
      %p196 = scmp.eq.s32.totalorder %s24, 1
      %p197 = por %p195, %p196
      %p199 = scmp.ne.s32.totalorder %s184, %s198
      %p200 = scmp.eq.s32.totalorder %s24, 0
      %p201 = por %p199, %p200
      %s203 = sadd.s32 %s202, 1
      %p206 = scmp.eq.s32.totalorder %s18, 1
      %p207 = scmp.ne.s32.totalorder %s202, %s204
      %p208 = scmp.eq.s32.totalorder %s18, 0
      %p209 = por %p207, %p208
      %p210 = scmp.ne.s32.totalorder %s202, %s204
      %p211 = scmp.eq.s32.totalorder %s23, 1
      %p212 = por %p210, %p211
      %p213 = scmp.ne.s32.totalorder %s204, %s205
      %p214 = scmp.eq.s32.totalorder %s23, 0
      %p215 = por %p213, %p214
      %p216 = scmp.ne.s32.totalorder %s204, %s205
      %p217 = scmp.eq.s32.totalorder %s24, 1
      %p218 = por %p216, %p217
      %p220 = scmp.ne.s32.totalorder %s205, %s219
      %p221 = scmp.eq.s32.totalorder %s24, 0
      %p222 = por %p220, %p221
      %s224 = sadd.s32 %s223, 1
      %p227 = scmp.eq.s32.totalorder %s18, 1
      %p228 = scmp.ne.s32.totalorder %s223, %s225
      %p229 = scmp.eq.s32.totalorder %s18, 0
      %p230 = por %p228, %p229
      %p231 = scmp.ne.s32.totalorder %s223, %s225
      %p232 = scmp.eq.s32.totalorder %s23, 1
      %p233 = por %p231, %p232
      %p234 = scmp.ne.s32.totalorder %s225, %s226
      %p235 = scmp.eq.s32.totalorder %s23, 0
      %p236 = por %p234, %p235
      %p237 = scmp.ne.s32.totalorder %s225, %s226
      %p238 = scmp.eq.s32.totalorder %s24, 1
      %p239 = por %p237, %p238
      %p241 = scmp.ne.s32.totalorder %s226, %s240
      %p242 = scmp.eq.s32.totalorder %s24, 0
      %p243 = por %p241, %p242
      %s244 = ssub.s32 %s25, %s37
      %s245 = ssub.s32 %s26, %s33
      %s246 = sor.u32 %s244, %s245
      %p247 = scmp.eq.s32.totalorder %s246, 0
      %s249 = sadd.s32 %s248, 1
      %s250 = scalar_select %p247, %s248, %s249
      %p253 = pneg %p247
      %p254 = scmp.eq.s32.totalorder %s18, 1
      %p255 = por %p253, %p254
      %p256 = scmp.ne.s32.totalorder %s248, %s251
      %p257 = scmp.eq.s32.totalorder %s18, 0
      %p258 = por %p256, %p257
      %p259 = scmp.ne.s32.totalorder %s248, %s251
      %p260 = scmp.eq.s32.totalorder %s23, 1
      %p261 = por %p259, %p260
      %p262 = scmp.ne.s32.totalorder %s251, %s252
      %p263 = scmp.eq.s32.totalorder %s23, 0
      %p264 = por %p262, %p263
      %p265 = scmp.ne.s32.totalorder %s251, %s252
      %p266 = scmp.eq.s32.totalorder %s24, 1
      %p267 = por %p265, %p266
      %p269 = scmp.ne.s32.totalorder %s252, %s268
      %p270 = scmp.eq.s32.totalorder %s24, 0
      %p271 = por %p269, %p270
      %p272 = scmp.le.s32.totalorder 1, %s18
      %p273 = scmp.lt.s32.totalorder %s18, 3
      %p274 = pnand %p272, %p273
      %p275 = pneg %p274
      // Predicated region
      $region9: #{tpu_custom_call.1} parent=5 // pred_check
        _
      $region10: #{tpu_custom_call.1} parent=5 // pred_check_branch
        %277 = sbr.rel (%p274) target = $region12
      $region11: #{tpu_custom_call.1} parent=5 // pred_region
        %s278 = ssub.s32 %s18, 1
        // Predicated region
        $region13: #{tpu_custom_call.1} parent=11 // pred_check
          %p279 = pneg %p131
        $region14: #{tpu_custom_call.1} parent=11 // pred_check_branch
          %281 = sbr.rel (%p279) target = $region16
        $region15: #{tpu_custom_call.1} parent=11 // pred_region
          _
        $region16: #{tpu_custom_call.1} parent=11 // pred_fallthru
          _
        // Predicated region
        $region17: #{tpu_custom_call.1} parent=11 // pred_check
          %p282 = pneg %p152
        $region18: #{tpu_custom_call.1} parent=11 // pred_check_branch
          %284 = sbr.rel (%p282) target = $region20
        $region19: #{tpu_custom_call.1} parent=11 // pred_region
          _
        $region20: #{tpu_custom_call.1} parent=11 // pred_fallthru
          _
        // Predicated region
        $region21: #{tpu_custom_call.1} parent=11 // pred_check
          %p285 = pneg %p173
        $region22: #{tpu_custom_call.1} parent=11 // pred_check_branch
          %287 = sbr.rel (%p285) target = $region24
        $region23: #{tpu_custom_call.1} parent=11 // pred_region
          _
        $region24: #{tpu_custom_call.1} parent=11 // pred_fallthru
          _
        // Predicated region
        $region25: #{tpu_custom_call.1} parent=11 // pred_check
          %p288 = pneg %p194
        $region26: #{tpu_custom_call.1} parent=11 // pred_check_branch
          %290 = sbr.rel (%p288) target = $region28
        $region27: #{tpu_custom_call.1} parent=11 // pred_region
          _
        $region28: #{tpu_custom_call.1} parent=11 // pred_fallthru
          _
        // Predicated region
        $region29: #{tpu_custom_call.1} parent=11 // pred_check
          %p291 = pneg %p215
        $region30: #{tpu_custom_call.1} parent=11 // pred_check_branch
          %293 = sbr.rel (%p291) target = $region32
        $region31: #{tpu_custom_call.1} parent=11 // pred_region
          _
        $region32: #{tpu_custom_call.1} parent=11 // pred_fallthru
          _
        // Predicated region
        $region33: #{tpu_custom_call.1} parent=11 // pred_check
          %p294 = pneg %p236
        $region34: #{tpu_custom_call.1} parent=11 // pred_check_branch
          %296 = sbr.rel (%p294) target = $region36
        $region35: #{tpu_custom_call.1} parent=11 // pred_region
          _
        $region36: #{tpu_custom_call.1} parent=11 // pred_fallthru
          _
      $region12: #{tpu_custom_call.1} parent=5 // pred_fallthru
        _
      %p297 = scmp.lt.s32.totalorder %s18, 2
      // Predicated region
      $region37: #{tpu_custom_call.1} parent=5 // pred_check
        %p298 = pneg %p297
      $region38: #{tpu_custom_call.1} parent=5 // pred_check_branch
        %300 = sbr.rel (%p298) target = $region40
      $region39: #{tpu_custom_call.1} parent=5 // pred_region
        // Predicated region
        $region41: #{tpu_custom_call.1} parent=39 // pred_check
          %p301 = pneg %p52
        $region42: #{tpu_custom_call.1} parent=39 // pred_check_branch
          %303 = sbr.rel (%p301) target = $region44
        $region43: #{tpu_custom_call.1} parent=39 // pred_region
          %p304 = scmp.lt.s32.totalorder %s25, 1
          %s305 = scalar_select %p304, %s25, 1
          %p306 = scmp.lt.s32.totalorder %s26, 0
          %s307 = scalar_select %p306, %s26, 0
          %s308 = sadd.s32 %s307, %s305
          %s309 = smul.addr %s308, 8
          %s310 = scalar_lea.vmem %s0, %s309
        $region44: #{tpu_custom_call.1} parent=39 // pred_fallthru
          _
        // Predicated region
        $region45: #{tpu_custom_call.1} parent=39 // pred_check
          %p311 = pneg %p78
        $region46: #{tpu_custom_call.1} parent=39 // pred_check_branch
          %313 = sbr.rel (%p311) target = $region48
        $region47: #{tpu_custom_call.1} parent=39 // pred_region
          %p314 = scmp.lt.s32.totalorder %s25, 1
          %s315 = scalar_select %p314, %s25, 1
          %s316 = smul.addr %s315, 8
          %s317 = scalar_lea.vmem %s1, %s316
        $region48: #{tpu_custom_call.1} parent=39 // pred_fallthru
          _
        // Predicated region
        $region49: #{tpu_custom_call.1} parent=39 // pred_check
          %p318 = pneg %p104
        $region50: #{tpu_custom_call.1} parent=39 // pred_check_branch
          %320 = sbr.rel (%p318) target = $region52
        $region51: #{tpu_custom_call.1} parent=39 // pred_region
          %p321 = scmp.lt.s32.totalorder %s25, 1
          %s322 = scalar_select %p321, %s25, 1
          %s323 = smul.addr %s322, 8
          %s324 = scalar_lea.vmem %s2, %s323
        $region52: #{tpu_custom_call.1} parent=39 // pred_fallthru
          _
      $region40: #{tpu_custom_call.1} parent=5 // pred_fallthru
        _
      %p325 = scmp.le.s32.totalorder 1, %s18
      %p326 = scmp.lt.s32.totalorder %s18, 3
      %p327 = pnand %p325, %p326
      %p328 = pneg %p327
      // Predicated region
      $region53: #{tpu_custom_call.1} parent=5 // pred_check
        _
      $region54: #{tpu_custom_call.1} parent=5 // pred_check_branch
        %330 = sbr.rel (%p327) target = $region56
      $region55: #{tpu_custom_call.1} parent=5 // pred_region
        %s331 = ssub.s32 %s18, 1
        %p332 = scmp.lt.s32.totalorder %s27, 1
        %s333 = scalar_select %p332, %s27, 1
        %p334 = scmp.lt.s32.totalorder %s28, 0
        %s335 = scalar_select %p334, %s28, 0
        %s336 = sadd.s32 %s335, %s333
        %s337 = smul.addr %s336, 8
        %s338 = scalar_lea.vmem %s0, %s337
        %p339 = pneg %p58
        %p340 = pneg %p55
        %p341 = scmp.lt.s32.totalorder %s27, 1
        %s342 = scalar_select %p341, %s27, 1
        %s343 = smul.addr %s342, 8
        %s344 = scalar_lea.vmem %s1, %s343
        %p345 = pneg %p84
        %p346 = pneg %p81
        %p347 = scmp.lt.s32.totalorder %s27, 1
        %s348 = scalar_select %p347, %s27, 1
        %s349 = smul.addr %s348, 8
        %s350 = scalar_lea.vmem %s2, %s349
        %p351 = pneg %p110
        %p352 = pneg %p107
        %p353 = pneg %p131
        %p354 = pneg %p128
        %p355 = pneg %p152
        %p356 = pneg %p149
        %p357 = pneg %p173
        %p358 = pneg %p170
        %p359 = pneg %p194
        %p360 = pneg %p191
        %p361 = pneg %p215
        %p362 = pneg %p212
        %p363 = pneg %p236
        %p364 = pneg %p233
        %p365 = pneg %p264
        %p366 = pneg %p261
        %s367 = sand.u32 %s251, 1
        %s368 = scalar_lea.sflag [#allocation3], %s367
        %s369 = sand.u32 %s251, 1
        %s370 = smul.addr %s369, 8
        %s371 = scalar_lea.vmem [#allocation2], %s370
        %p372 = scmp.lt.s32.totalorder %s27, 1
        %s373 = scalar_select %p372, %s27, 1
        %p374 = scmp.lt.s32.totalorder %s28, 0
        %s375 = scalar_select %p374, %s28, 0
        %s376 = sadd.s32 %s375, %s373
        %s377 = smul.addr %s376, 8
        %s378 = scalar_lea.vmem %s0, %s377
        %p379 = scmp.lt.s32.totalorder %s27, 1
        %s380 = scalar_select %p379, %s27, 1
        %s381 = smul.addr %s380, 8
        %s382 = scalar_lea.vmem %s1, %s381
        %p383 = scmp.lt.s32.totalorder %s27, 1
        %s384 = scalar_select %p383, %s27, 1
        %s385 = smul.addr %s384, 8
        %s386 = scalar_lea.vmem %s2, %s385
        %v387 = vld [vmem:[%s378] sm:$0xff]
        %v388 = vld [vmem:[%s382] sm:$0xff]
        %v389 = vld [vmem:[%s386] sm:$0xff]
        %v390 = vld [vmem:[%s3] sm:$0xff]
        %v391 = vld [vmem:[%s3 + $0x8] sm:$0xff]
        %v392 = vld [vmem:[%s3 + $0x10] sm:$0xff]
        %v393 = vld [vmem:[%s3 + $0x18] sm:$0xff]
        %v394 = vld [vmem:[%s3 + $0x20] sm:$0xff]
        %v395 = vld [vmem:[%s3 + $0x28] sm:$0xff]
        %v396 = vld [vmem:[%s3 + $0x30] sm:$0xff]
        %v397 = vld [vmem:[%s3 + $0x38] sm:$0xff]
        %v398 = vld [vmem:[%s3 + $0x40] sm:$0xff]
        %v399 = vld [vmem:[%s3 + $0x48] sm:$0xff]
        %v400 = vld [vmem:[%s3 + $0x50] sm:$0xff]
        %v401 = vld [vmem:[%s3 + $0x58] sm:$0xff]
        %v402 = vld [vmem:[%s3 + $0x60] sm:$0xff]
        %v403 = vld [vmem:[%s3 + $0x68] sm:$0xff]
        %v404 = vld [vmem:[%s3 + $0x70] sm:$0xff]
        %v405 = vld [vmem:[%s3 + $0x78] sm:$0xff]
        %vm406 = vcmask 261120
        %v408 = vsel %vm406, %v387, 0
        %410 = vmatprep.subr.mxu0 0.0
        %411 = vmatpush1.msra.mxu0 0.0
        %412 = vmatprep.subr.mxu0 0.0
        %413 = vmatpush1.msra.mxu0 0.0
        %414 = vmatprep.subr.mxu0 0.0
        %415 = vmatpush1.msra.mxu0 0.0
        %416 = vmatprep.subr.mxu0 0.0
        %417 = vmatpush1.msra.mxu0 0.0
        %418 = vmatprep.subr.mxu0 0.0
        %419 = vmatpush1.msra.mxu0 0.0
        %420 = vmatprep.subr.mxu0 0.0
        %421 = vmatpush1.msra.mxu0 0.0
        %422 = vmatprep.subr.mxu0 0.0
        %423 = vmatpush1.msra.mxu0 0.0
        %424 = vmatprep.subr.mxu0 0.0
        %425 = vmatpush1.msra.mxu0 0.0
        %426 = vmatprep.subr.mxu0 0.0
        %427 = vmatpush1.msra.mxu0 0.0
        %428 = vmatprep.subr.mxu0 0.0
        %429 = vmatpush1.msra.mxu0 0.0
        %430 = vmatprep.subr.mxu0 0.0
        %431 = vmatpush1.msra.mxu0 0.0
        %432 = vmatprep.subr.mxu0 0.0
        %433 = vmatpush1.msra.mxu0 0.0
        %434 = vmatprep.subr.mxu0 0.0
        %435 = vmatpush1.msra.mxu0 %v393
        %436 = vmatprep.subr.mxu0 0.0
        %437 = vmatpush1.msra.mxu0 %v392
        %438 = vmatprep.subr.mxu0 0.0
        %439 = vmatpush1.msra.mxu0 %v391
        %440 = vmatprep.subr.mxu0 0.0
        %441 = vmatpush1.msra.mxu0 %v390
        %442 = vmatprep.subr.mxu0 0.0
        %443 = vmatpush2.msra.mxu0 0.0
        %444 = vmatprep.subr.mxu0 0.0
        %445 = vmatpush2.msra.mxu0 0.0
        %446 = vmatprep.subr.mxu0 0.0
        %447 = vmatpush2.msra.mxu0 0.0
        %448 = vmatprep.subr.mxu0 0.0
        %449 = vmatpush2.msra.mxu0 0.0
        %450 = vmatprep.subr.mxu0 0.0
        %451 = vmatpush2.msra.mxu0 0.0
        %452 = vmatprep.subr.mxu0 0.0
        %453 = vmatpush2.msra.mxu0 0.0
        %454 = vmatprep.subr.mxu0 0.0
        %455 = vmatpush2.msra.mxu0 0.0
        %456 = vmatprep.subr.mxu0 0.0
        %457 = vmatpush2.msra.mxu0 0.0
        %458 = vmatprep.subr.mxu0 0.0
        %459 = vmatpush2.msra.mxu0 0.0
        %460 = vmatprep.subr.mxu0 0.0
        %461 = vmatpush2.msra.mxu0 0.0
        %462 = vmatprep.subr.mxu0 0.0
        %463 = vmatpush2.msra.mxu0 0.0
        %464 = vmatprep.subr.mxu0 0.0
        %465 = vmatpush2.msra.mxu0 0.0
        %466 = vmatprep.subr.mxu0 0.0
        %467 = vmatpush2.msra.mxu0 0.0
        %468 = vmatprep.subr.mxu0 0.0
        %469 = vmatpush2.msra.mxu0 0.0
        %470 = vmatprep.subr.mxu0 0.0
        %471 = vmatpush2.msra.mxu0 0.0
        %472 = vmatprep.subr.mxu0 0.0
        %473 = vmatpush2.msra.mxu0 0.0
        %474 = vmatprep.mubr.f32.mxu0 0.0
        %475 = vmatmul.mubr.f32.gmra.mxu0 %v408
        %v476 = vpop.f32.mrf.mxu0
        %v477 = vadd.f32 0.0, %v476
        %v478 = vpop.f32.mrf.mxu0
        %479 = vdwg.mxu0
        %480 = vmatprep.subr.mxu0 0.0
        %481 = vmatpush1.msra.mxu0 0.0
        %482 = vmatprep.subr.mxu0 0.0
        %483 = vmatpush1.msra.mxu0 0.0
        %484 = vmatprep.subr.mxu0 0.0
        %485 = vmatpush1.msra.mxu0 0.0
        %486 = vmatprep.subr.mxu0 0.0
        %487 = vmatpush1.msra.mxu0 0.0
        %488 = vmatprep.subr.mxu0 0.0
        %489 = vmatpush1.msra.mxu0 0.0
        %490 = vmatprep.subr.mxu0 0.0
        %491 = vmatpush1.msra.mxu0 0.0
        %492 = vmatprep.subr.mxu0 0.0
        %493 = vmatpush1.msra.mxu0 0.0
        %494 = vmatprep.subr.mxu0 0.0
        %495 = vmatpush1.msra.mxu0 0.0
        %496 = vmatprep.subr.mxu0 0.0
        %497 = vmatpush1.msra.mxu0 0.0
        %498 = vmatprep.subr.mxu0 0.0
        %499 = vmatpush1.msra.mxu0 0.0
        %500 = vmatprep.subr.mxu0 0.0
        %501 = vmatpush1.msra.mxu0 0.0
        %502 = vmatprep.subr.mxu0 0.0
        %503 = vmatpush1.msra.mxu0 0.0
        %504 = vmatprep.subr.mxu0 0.0
        %505 = vmatpush1.msra.mxu0 %v397
        %506 = vmatprep.subr.mxu0 0.0
        %507 = vmatpush1.msra.mxu0 %v396
        %508 = vmatprep.subr.mxu0 0.0
        %509 = vmatpush1.msra.mxu0 %v395
        %510 = vmatprep.subr.mxu0 0.0
        %511 = vmatpush1.msra.mxu0 %v394
        %512 = vmatprep.subr.mxu0 0.0
        %513 = vmatpush2.msra.mxu0 0.0
        %514 = vmatprep.subr.mxu0 0.0
        %515 = vmatpush2.msra.mxu0 0.0
        %516 = vmatprep.subr.mxu0 0.0
        %517 = vmatpush2.msra.mxu0 0.0
        %518 = vmatprep.subr.mxu0 0.0
        %519 = vmatpush2.msra.mxu0 0.0
        %520 = vmatprep.subr.mxu0 0.0
        %521 = vmatpush2.msra.mxu0 0.0
        %522 = vmatprep.subr.mxu0 0.0
        %523 = vmatpush2.msra.mxu0 0.0
        %524 = vmatprep.subr.mxu0 0.0
        %525 = vmatpush2.msra.mxu0 0.0
        %526 = vmatprep.subr.mxu0 0.0
        %527 = vmatpush2.msra.mxu0 0.0
        %528 = vmatprep.subr.mxu0 0.0
        %529 = vmatpush2.msra.mxu0 0.0
        %530 = vmatprep.subr.mxu0 0.0
        %531 = vmatpush2.msra.mxu0 0.0
        %532 = vmatprep.subr.mxu0 0.0
        %533 = vmatpush2.msra.mxu0 0.0
        %534 = vmatprep.subr.mxu0 0.0
        %535 = vmatpush2.msra.mxu0 0.0
        %536 = vmatprep.subr.mxu0 0.0
        %537 = vmatpush2.msra.mxu0 0.0
        %538 = vmatprep.subr.mxu0 0.0
        %539 = vmatpush2.msra.mxu0 0.0
        %540 = vmatprep.subr.mxu0 0.0
        %541 = vmatpush2.msra.mxu0 0.0
        %542 = vmatprep.subr.mxu0 0.0
        %543 = vmatpush2.msra.mxu0 0.0
        %544 = vmatprep.mubr.f32.mxu0 0.0
        %545 = vmatmul.mubr.f32.gmra.mxu0 %v408
        %v546 = vpop.f32.mrf.mxu0
        %v547 = vadd.f32 0.0, %v546
        %v548 = vpop.f32.mrf.mxu0
        %549 = vdwg.mxu0
        %550 = vmatprep.subr.mxu0 0.0
        %551 = vmatpush1.msra.mxu0 0.0
        %552 = vmatprep.subr.mxu0 0.0
        %553 = vmatpush1.msra.mxu0 0.0
        %554 = vmatprep.subr.mxu0 0.0
        %555 = vmatpush1.msra.mxu0 0.0
        %556 = vmatprep.subr.mxu0 0.0
        %557 = vmatpush1.msra.mxu0 0.0
        %558 = vmatprep.subr.mxu0 0.0
        %559 = vmatpush1.msra.mxu0 0.0
        %560 = vmatprep.subr.mxu0 0.0
        %561 = vmatpush1.msra.mxu0 0.0
        %562 = vmatprep.subr.mxu0 0.0
        %563 = vmatpush1.msra.mxu0 0.0
        %564 = vmatprep.subr.mxu0 0.0
        %565 = vmatpush1.msra.mxu0 0.0
        %566 = vmatprep.subr.mxu0 0.0
        %567 = vmatpush1.msra.mxu0 0.0
        %568 = vmatprep.subr.mxu0 0.0
        %569 = vmatpush1.msra.mxu0 0.0
        %570 = vmatprep.subr.mxu0 0.0
        %571 = vmatpush1.msra.mxu0 0.0
        %572 = vmatprep.subr.mxu0 0.0
        %573 = vmatpush1.msra.mxu0 0.0
        %574 = vmatprep.subr.mxu0 0.0
        %575 = vmatpush1.msra.mxu0 %v401
        %576 = vmatprep.subr.mxu0 0.0
        %577 = vmatpush1.msra.mxu0 %v400
        %578 = vmatprep.subr.mxu0 0.0
        %579 = vmatpush1.msra.mxu0 %v399
        %580 = vmatprep.subr.mxu0 0.0
        %581 = vmatpush1.msra.mxu0 %v398
        %582 = vmatprep.subr.mxu0 0.0
        %583 = vmatpush2.msra.mxu0 0.0
        %584 = vmatprep.subr.mxu0 0.0
        %585 = vmatpush2.msra.mxu0 0.0
        %586 = vmatprep.subr.mxu0 0.0
        %587 = vmatpush2.msra.mxu0 0.0
        %588 = vmatprep.subr.mxu0 0.0
        %589 = vmatpush2.msra.mxu0 0.0
        %590 = vmatprep.subr.mxu0 0.0
        %591 = vmatpush2.msra.mxu0 0.0
        %592 = vmatprep.subr.mxu0 0.0
        %593 = vmatpush2.msra.mxu0 0.0
        %594 = vmatprep.subr.mxu0 0.0
        %595 = vmatpush2.msra.mxu0 0.0
        %596 = vmatprep.subr.mxu0 0.0
        %597 = vmatpush2.msra.mxu0 0.0
        %598 = vmatprep.subr.mxu0 0.0
        %599 = vmatpush2.msra.mxu0 0.0
        %600 = vmatprep.subr.mxu0 0.0
        %601 = vmatpush2.msra.mxu0 0.0
        %602 = vmatprep.subr.mxu0 0.0
        %603 = vmatpush2.msra.mxu0 0.0
        %604 = vmatprep.subr.mxu0 0.0
        %605 = vmatpush2.msra.mxu0 0.0
        %606 = vmatprep.subr.mxu0 0.0
        %607 = vmatpush2.msra.mxu0 0.0
        %608 = vmatprep.subr.mxu0 0.0
        %609 = vmatpush2.msra.mxu0 0.0
        %610 = vmatprep.subr.mxu0 0.0
        %611 = vmatpush2.msra.mxu0 0.0
        %612 = vmatprep.subr.mxu0 0.0
        %613 = vmatpush2.msra.mxu0 0.0
        %614 = vmatprep.mubr.f32.mxu0 0.0
        %615 = vmatmul.mubr.f32.gmra.mxu0 %v408
        %v616 = vpop.f32.mrf.mxu0
        %v617 = vadd.f32 0.0, %v616
        %v618 = vpop.f32.mrf.mxu0
        %619 = vdwg.mxu0
        %620 = vmatprep.subr.mxu0 0.0
        %621 = vmatpush1.msra.mxu0 0.0
        %622 = vmatprep.subr.mxu0 0.0
        %623 = vmatpush1.msra.mxu0 0.0
        %624 = vmatprep.subr.mxu0 0.0
        %625 = vmatpush1.msra.mxu0 0.0
        %626 = vmatprep.subr.mxu0 0.0
        %627 = vmatpush1.msra.mxu0 0.0
        %628 = vmatprep.subr.mxu0 0.0
        %629 = vmatpush1.msra.mxu0 0.0
        %630 = vmatprep.subr.mxu0 0.0
        %631 = vmatpush1.msra.mxu0 0.0
        %632 = vmatprep.subr.mxu0 0.0
        %633 = vmatpush1.msra.mxu0 0.0
        %634 = vmatprep.subr.mxu0 0.0
        %635 = vmatpush1.msra.mxu0 0.0
        %636 = vmatprep.subr.mxu0 0.0
        %637 = vmatpush1.msra.mxu0 0.0
        %638 = vmatprep.subr.mxu0 0.0
        %639 = vmatpush1.msra.mxu0 0.0
        %640 = vmatprep.subr.mxu0 0.0
        %641 = vmatpush1.msra.mxu0 0.0
        %642 = vmatprep.subr.mxu0 0.0
        %643 = vmatpush1.msra.mxu0 0.0
        %644 = vmatprep.subr.mxu0 0.0
        %645 = vmatpush1.msra.mxu0 %v405
        %646 = vmatprep.subr.mxu0 0.0
        %647 = vmatpush1.msra.mxu0 %v404
        %648 = vmatprep.subr.mxu0 0.0
        %649 = vmatpush1.msra.mxu0 %v403
        %650 = vmatprep.subr.mxu0 0.0
        %651 = vmatpush1.msra.mxu0 %v402
        %652 = vmatprep.subr.mxu0 0.0
        %653 = vmatpush2.msra.mxu0 0.0
        %654 = vmatprep.subr.mxu0 0.0
        %655 = vmatpush2.msra.mxu0 0.0
        %656 = vmatprep.subr.mxu0 0.0
        %657 = vmatpush2.msra.mxu0 0.0
        %658 = vmatprep.subr.mxu0 0.0
        %659 = vmatpush2.msra.mxu0 0.0
        %660 = vmatprep.subr.mxu0 0.0
        %661 = vmatpush2.msra.mxu0 0.0
        %662 = vmatprep.subr.mxu0 0.0
        %663 = vmatpush2.msra.mxu0 0.0
        %664 = vmatprep.subr.mxu0 0.0
        %665 = vmatpush2.msra.mxu0 0.0
        %666 = vmatprep.subr.mxu0 0.0
        %667 = vmatpush2.msra.mxu0 0.0
        %668 = vmatprep.subr.mxu0 0.0
        %669 = vmatpush2.msra.mxu0 0.0
        %670 = vmatprep.subr.mxu0 0.0
        %671 = vmatpush2.msra.mxu0 0.0
        %672 = vmatprep.subr.mxu0 0.0
        %673 = vmatpush2.msra.mxu0 0.0
        %674 = vmatprep.subr.mxu0 0.0
        %675 = vmatpush2.msra.mxu0 0.0
        %676 = vmatprep.subr.mxu0 0.0
        %677 = vmatpush2.msra.mxu0 0.0
        %678 = vmatprep.subr.mxu0 0.0
        %679 = vmatpush2.msra.mxu0 0.0
        %680 = vmatprep.subr.mxu0 0.0
        %681 = vmatpush2.msra.mxu0 0.0
        %682 = vmatprep.subr.mxu0 0.0
        %683 = vmatpush2.msra.mxu0 0.0
        %684 = vmatprep.mubr.f32.mxu0 0.0
        %685 = vmatmul.mubr.f32.gmra.mxu0 %v408
        %v686 = vpop.f32.mrf.mxu0
        %v687 = vadd.f32 0.0, %v686
        %v688 = vpop.f32.mrf.mxu0
        %689 = vdwg.mxu0
        %v690 = vld [vmem:[%s4] sm:$0xff]
        %v691 = vld [vmem:[%s4 + $0x8] sm:$0xff]
        %v692 = vld [vmem:[%s4 + $0x10] sm:$0xff]
        %v693 = vld [vmem:[%s4 + $0x18] sm:$0xff]
        %v694 = vld [vmem:[%s4 + $0x20] sm:$0xff]
        %v695 = vld [vmem:[%s4 + $0x28] sm:$0xff]
        %v696 = vld [vmem:[%s4 + $0x30] sm:$0xff]
        %v697 = vld [vmem:[%s4 + $0x38] sm:$0xff]
        %v698 = vld [vmem:[%s4 + $0x40] sm:$0xff]
        %v699 = vld [vmem:[%s4 + $0x48] sm:$0xff]
        %v700 = vld [vmem:[%s4 + $0x50] sm:$0xff]
        %v701 = vld [vmem:[%s4 + $0x58] sm:$0xff]
        %v702 = vld [vmem:[%s4 + $0x60] sm:$0xff]
        %v703 = vld [vmem:[%s4 + $0x68] sm:$0xff]
        %v704 = vld [vmem:[%s4 + $0x70] sm:$0xff]
        %v705 = vld [vmem:[%s4 + $0x78] sm:$0xff]
        %v707 = vsel %vm406, %v388, 0
        %709 = vmatprep.subr.mxu0 0.0
        %710 = vmatpush1.msra.mxu0 0.0
        %711 = vmatprep.subr.mxu0 0.0
        %712 = vmatpush1.msra.mxu0 0.0
        %713 = vmatprep.subr.mxu0 0.0
        %714 = vmatpush1.msra.mxu0 0.0
        %715 = vmatprep.subr.mxu0 0.0
        %716 = vmatpush1.msra.mxu0 0.0
        %717 = vmatprep.subr.mxu0 0.0
        %718 = vmatpush1.msra.mxu0 0.0
        %719 = vmatprep.subr.mxu0 0.0
        %720 = vmatpush1.msra.mxu0 0.0
        %721 = vmatprep.subr.mxu0 0.0
        %722 = vmatpush1.msra.mxu0 0.0
        %723 = vmatprep.subr.mxu0 0.0
        %724 = vmatpush1.msra.mxu0 0.0
        %725 = vmatprep.subr.mxu0 0.0
        %726 = vmatpush1.msra.mxu0 0.0
        %727 = vmatprep.subr.mxu0 0.0
        %728 = vmatpush1.msra.mxu0 0.0
        %729 = vmatprep.subr.mxu0 0.0
        %730 = vmatpush1.msra.mxu0 0.0
        %731 = vmatprep.subr.mxu0 0.0
        %732 = vmatpush1.msra.mxu0 0.0
        %733 = vmatprep.subr.mxu0 0.0
        %734 = vmatpush1.msra.mxu0 %v693
        %735 = vmatprep.subr.mxu0 0.0
        %736 = vmatpush1.msra.mxu0 %v692
        %737 = vmatprep.subr.mxu0 0.0
        %738 = vmatpush1.msra.mxu0 %v691
        %739 = vmatprep.subr.mxu0 0.0
        %740 = vmatpush1.msra.mxu0 %v690
        %741 = vmatprep.subr.mxu0 0.0
        %742 = vmatpush2.msra.mxu0 0.0
        %743 = vmatprep.subr.mxu0 0.0
        %744 = vmatpush2.msra.mxu0 0.0
        %745 = vmatprep.subr.mxu0 0.0
        %746 = vmatpush2.msra.mxu0 0.0
        %747 = vmatprep.subr.mxu0 0.0
        %748 = vmatpush2.msra.mxu0 0.0
        %749 = vmatprep.subr.mxu0 0.0
        %750 = vmatpush2.msra.mxu0 0.0
        %751 = vmatprep.subr.mxu0 0.0
        %752 = vmatpush2.msra.mxu0 0.0
        %753 = vmatprep.subr.mxu0 0.0
        %754 = vmatpush2.msra.mxu0 0.0
        %755 = vmatprep.subr.mxu0 0.0
        %756 = vmatpush2.msra.mxu0 0.0
        %757 = vmatprep.subr.mxu0 0.0
        %758 = vmatpush2.msra.mxu0 0.0
        %759 = vmatprep.subr.mxu0 0.0
        %760 = vmatpush2.msra.mxu0 0.0
        %761 = vmatprep.subr.mxu0 0.0
        %762 = vmatpush2.msra.mxu0 0.0
        %763 = vmatprep.subr.mxu0 0.0
        %764 = vmatpush2.msra.mxu0 0.0
        %765 = vmatprep.subr.mxu0 0.0
        %766 = vmatpush2.msra.mxu0 0.0
        %767 = vmatprep.subr.mxu0 0.0
        %768 = vmatpush2.msra.mxu0 0.0
        %769 = vmatprep.subr.mxu0 0.0
        %770 = vmatpush2.msra.mxu0 0.0
        %771 = vmatprep.subr.mxu0 0.0
        %772 = vmatpush2.msra.mxu0 0.0
        %773 = vmatprep.mubr.f32.mxu0 0.0
        %774 = vmatmul.mubr.f32.gmra.mxu0 %v707
        %v775 = vpop.f32.mrf.mxu0
        %v776 = vadd.f32 0.0, %v775
        %v777 = vpop.f32.mrf.mxu0
        %778 = vdwg.mxu0
        %779 = vmatprep.subr.mxu0 0.0
        %780 = vmatpush1.msra.mxu0 0.0
        %781 = vmatprep.subr.mxu0 0.0
        %782 = vmatpush1.msra.mxu0 0.0
        %783 = vmatprep.subr.mxu0 0.0
        %784 = vmatpush1.msra.mxu0 0.0
        %785 = vmatprep.subr.mxu0 0.0
        %786 = vmatpush1.msra.mxu0 0.0
        %787 = vmatprep.subr.mxu0 0.0
        %788 = vmatpush1.msra.mxu0 0.0
        %789 = vmatprep.subr.mxu0 0.0
        %790 = vmatpush1.msra.mxu0 0.0
        %791 = vmatprep.subr.mxu0 0.0
        %792 = vmatpush1.msra.mxu0 0.0
        %793 = vmatprep.subr.mxu0 0.0
        %794 = vmatpush1.msra.mxu0 0.0
        %795 = vmatprep.subr.mxu0 0.0
        %796 = vmatpush1.msra.mxu0 0.0
        %797 = vmatprep.subr.mxu0 0.0
        %798 = vmatpush1.msra.mxu0 0.0
        %799 = vmatprep.subr.mxu0 0.0
        %800 = vmatpush1.msra.mxu0 0.0
        %801 = vmatprep.subr.mxu0 0.0
        %802 = vmatpush1.msra.mxu0 0.0
        %803 = vmatprep.subr.mxu0 0.0
        %804 = vmatpush1.msra.mxu0 %v697
        %805 = vmatprep.subr.mxu0 0.0
        %806 = vmatpush1.msra.mxu0 %v696
        %807 = vmatprep.subr.mxu0 0.0
        %808 = vmatpush1.msra.mxu0 %v695
        %809 = vmatprep.subr.mxu0 0.0
        %810 = vmatpush1.msra.mxu0 %v694
        %811 = vmatprep.subr.mxu0 0.0
        %812 = vmatpush2.msra.mxu0 0.0
        %813 = vmatprep.subr.mxu0 0.0
        %814 = vmatpush2.msra.mxu0 0.0
        %815 = vmatprep.subr.mxu0 0.0
        %816 = vmatpush2.msra.mxu0 0.0
        %817 = vmatprep.subr.mxu0 0.0
        %818 = vmatpush2.msra.mxu0 0.0
        %819 = vmatprep.subr.mxu0 0.0
        %820 = vmatpush2.msra.mxu0 0.0
        %821 = vmatprep.subr.mxu0 0.0
        %822 = vmatpush2.msra.mxu0 0.0
        %823 = vmatprep.subr.mxu0 0.0
        %824 = vmatpush2.msra.mxu0 0.0
        %825 = vmatprep.subr.mxu0 0.0
        %826 = vmatpush2.msra.mxu0 0.0
        %827 = vmatprep.subr.mxu0 0.0
        %828 = vmatpush2.msra.mxu0 0.0
        %829 = vmatprep.subr.mxu0 0.0
        %830 = vmatpush2.msra.mxu0 0.0
        %831 = vmatprep.subr.mxu0 0.0
        %832 = vmatpush2.msra.mxu0 0.0
        %833 = vmatprep.subr.mxu0 0.0
        %834 = vmatpush2.msra.mxu0 0.0
        %835 = vmatprep.subr.mxu0 0.0
        %836 = vmatpush2.msra.mxu0 0.0
        %837 = vmatprep.subr.mxu0 0.0
        %838 = vmatpush2.msra.mxu0 0.0
        %839 = vmatprep.subr.mxu0 0.0
        %840 = vmatpush2.msra.mxu0 0.0
        %841 = vmatprep.subr.mxu0 0.0
        %842 = vmatpush2.msra.mxu0 0.0
        %843 = vmatprep.mubr.f32.mxu0 0.0
        %844 = vmatmul.mubr.f32.gmra.mxu0 %v707
        %v845 = vpop.f32.mrf.mxu0
        %v846 = vadd.f32 0.0, %v845
        %v847 = vpop.f32.mrf.mxu0
        %848 = vdwg.mxu0
        %849 = vmatprep.subr.mxu0 0.0
        %850 = vmatpush1.msra.mxu0 0.0
        %851 = vmatprep.subr.mxu0 0.0
        %852 = vmatpush1.msra.mxu0 0.0
        %853 = vmatprep.subr.mxu0 0.0
        %854 = vmatpush1.msra.mxu0 0.0
        %855 = vmatprep.subr.mxu0 0.0
        %856 = vmatpush1.msra.mxu0 0.0
        %857 = vmatprep.subr.mxu0 0.0
        %858 = vmatpush1.msra.mxu0 0.0
        %859 = vmatprep.subr.mxu0 0.0
        %860 = vmatpush1.msra.mxu0 0.0
        %861 = vmatprep.subr.mxu0 0.0
        %862 = vmatpush1.msra.mxu0 0.0
        %863 = vmatprep.subr.mxu0 0.0
        %864 = vmatpush1.msra.mxu0 0.0
        %865 = vmatprep.subr.mxu0 0.0
        %866 = vmatpush1.msra.mxu0 0.0
        %867 = vmatprep.subr.mxu0 0.0
        %868 = vmatpush1.msra.mxu0 0.0
        %869 = vmatprep.subr.mxu0 0.0
        %870 = vmatpush1.msra.mxu0 0.0
        %871 = vmatprep.subr.mxu0 0.0
        %872 = vmatpush1.msra.mxu0 0.0
        %873 = vmatprep.subr.mxu0 0.0
        %874 = vmatpush1.msra.mxu0 %v701
        %875 = vmatprep.subr.mxu0 0.0
        %876 = vmatpush1.msra.mxu0 %v700
        %877 = vmatprep.subr.mxu0 0.0
        %878 = vmatpush1.msra.mxu0 %v699
        %879 = vmatprep.subr.mxu0 0.0
        %880 = vmatpush1.msra.mxu0 %v698
        %881 = vmatprep.subr.mxu0 0.0
        %882 = vmatpush2.msra.mxu0 0.0
        %883 = vmatprep.subr.mxu0 0.0
        %884 = vmatpush2.msra.mxu0 0.0
        %885 = vmatprep.subr.mxu0 0.0
        %886 = vmatpush2.msra.mxu0 0.0
        %887 = vmatprep.subr.mxu0 0.0
        %888 = vmatpush2.msra.mxu0 0.0
        %889 = vmatprep.subr.mxu0 0.0
        %890 = vmatpush2.msra.mxu0 0.0
        %891 = vmatprep.subr.mxu0 0.0
        %892 = vmatpush2.msra.mxu0 0.0
        %893 = vmatprep.subr.mxu0 0.0
        %894 = vmatpush2.msra.mxu0 0.0
        %895 = vmatprep.subr.mxu0 0.0
        %896 = vmatpush2.msra.mxu0 0.0
        %897 = vmatprep.subr.mxu0 0.0
        %898 = vmatpush2.msra.mxu0 0.0
        %899 = vmatprep.subr.mxu0 0.0
        %900 = vmatpush2.msra.mxu0 0.0
        %901 = vmatprep.subr.mxu0 0.0
        %902 = vmatpush2.msra.mxu0 0.0
        %903 = vmatprep.subr.mxu0 0.0
        %904 = vmatpush2.msra.mxu0 0.0
        %905 = vmatprep.subr.mxu0 0.0
        %906 = vmatpush2.msra.mxu0 0.0
        %907 = vmatprep.subr.mxu0 0.0
        %908 = vmatpush2.msra.mxu0 0.0
        %909 = vmatprep.subr.mxu0 0.0
        %910 = vmatpush2.msra.mxu0 0.0
        %911 = vmatprep.subr.mxu0 0.0
        %912 = vmatpush2.msra.mxu0 0.0
        %913 = vmatprep.mubr.f32.mxu0 0.0
        %914 = vmatmul.mubr.f32.gmra.mxu0 %v707
        %v915 = vpop.f32.mrf.mxu0
        %v916 = vadd.f32 0.0, %v915
        %v917 = vpop.f32.mrf.mxu0
        %918 = vdwg.mxu0
        %919 = vmatprep.subr.mxu0 0.0
        %920 = vmatpush1.msra.mxu0 0.0
        %921 = vmatprep.subr.mxu0 0.0
        %922 = vmatpush1.msra.mxu0 0.0
        %923 = vmatprep.subr.mxu0 0.0
        %924 = vmatpush1.msra.mxu0 0.0
        %925 = vmatprep.subr.mxu0 0.0
        %926 = vmatpush1.msra.mxu0 0.0
        %927 = vmatprep.subr.mxu0 0.0
        %928 = vmatpush1.msra.mxu0 0.0
        %929 = vmatprep.subr.mxu0 0.0
        %930 = vmatpush1.msra.mxu0 0.0
        %931 = vmatprep.subr.mxu0 0.0
        %932 = vmatpush1.msra.mxu0 0.0
        %933 = vmatprep.subr.mxu0 0.0
        %934 = vmatpush1.msra.mxu0 0.0
        %935 = vmatprep.subr.mxu0 0.0
        %936 = vmatpush1.msra.mxu0 0.0
        %937 = vmatprep.subr.mxu0 0.0
        %938 = vmatpush1.msra.mxu0 0.0
        %939 = vmatprep.subr.mxu0 0.0
        %940 = vmatpush1.msra.mxu0 0.0
        %941 = vmatprep.subr.mxu0 0.0
        %942 = vmatpush1.msra.mxu0 0.0
        %943 = vmatprep.subr.mxu0 0.0
        %944 = vmatpush1.msra.mxu0 %v705
        %945 = vmatprep.subr.mxu0 0.0
        %946 = vmatpush1.msra.mxu0 %v704
        %947 = vmatprep.subr.mxu0 0.0
        %948 = vmatpush1.msra.mxu0 %v703
        %949 = vmatprep.subr.mxu0 0.0
        %950 = vmatpush1.msra.mxu0 %v702
        %951 = vmatprep.subr.mxu0 0.0
        %952 = vmatpush2.msra.mxu0 0.0
        %953 = vmatprep.subr.mxu0 0.0
        %954 = vmatpush2.msra.mxu0 0.0
        %955 = vmatprep.subr.mxu0 0.0
        %956 = vmatpush2.msra.mxu0 0.0
        %957 = vmatprep.subr.mxu0 0.0
        %958 = vmatpush2.msra.mxu0 0.0
        %959 = vmatprep.subr.mxu0 0.0
        %960 = vmatpush2.msra.mxu0 0.0
        %961 = vmatprep.subr.mxu0 0.0
        %962 = vmatpush2.msra.mxu0 0.0
        %963 = vmatprep.subr.mxu0 0.0
        %964 = vmatpush2.msra.mxu0 0.0
        %965 = vmatprep.subr.mxu0 0.0
        %966 = vmatpush2.msra.mxu0 0.0
        %967 = vmatprep.subr.mxu0 0.0
        %968 = vmatpush2.msra.mxu0 0.0
        %969 = vmatprep.subr.mxu0 0.0
        %970 = vmatpush2.msra.mxu0 0.0
        %971 = vmatprep.subr.mxu0 0.0
        %972 = vmatpush2.msra.mxu0 0.0
        %973 = vmatprep.subr.mxu0 0.0
        %974 = vmatpush2.msra.mxu0 0.0
        %975 = vmatprep.subr.mxu0 0.0
        %976 = vmatpush2.msra.mxu0 0.0
        %977 = vmatprep.subr.mxu0 0.0
        %978 = vmatpush2.msra.mxu0 0.0
        %979 = vmatprep.subr.mxu0 0.0
        %980 = vmatpush2.msra.mxu0 0.0
        %981 = vmatprep.subr.mxu0 0.0
        %982 = vmatpush2.msra.mxu0 0.0
        %983 = vmatprep.mubr.f32.mxu0 0.0
        %984 = vmatmul.mubr.f32.gmra.mxu0 %v707
        %v985 = vpop.f32.mrf.mxu0
        %v986 = vadd.f32 0.0, %v985
        %v987 = vpop.f32.mrf.mxu0
        %988 = vdwg.mxu0
        %v989 = vld [vmem:[%s5] sm:$0xff]
        %v990 = vld [vmem:[%s5 + $0x8] sm:$0xff]
        %v991 = vld [vmem:[%s5 + $0x10] sm:$0xff]
        %v992 = vld [vmem:[%s5 + $0x18] sm:$0xff]
        %v993 = vld [vmem:[%s5 + $0x20] sm:$0xff]
        %v994 = vld [vmem:[%s5 + $0x28] sm:$0xff]
        %v995 = vld [vmem:[%s5 + $0x30] sm:$0xff]
        %v996 = vld [vmem:[%s5 + $0x38] sm:$0xff]
        %v997 = vld [vmem:[%s5 + $0x40] sm:$0xff]
        %v998 = vld [vmem:[%s5 + $0x48] sm:$0xff]
        %v999 = vld [vmem:[%s5 + $0x50] sm:$0xff]
        %v1000 = vld [vmem:[%s5 + $0x58] sm:$0xff]
        %v1001 = vld [vmem:[%s5 + $0x60] sm:$0xff]
        %v1002 = vld [vmem:[%s5 + $0x68] sm:$0xff]
        %v1003 = vld [vmem:[%s5 + $0x70] sm:$0xff]
        %v1004 = vld [vmem:[%s5 + $0x78] sm:$0xff]
        %v1006 = vsel %vm406, %v389, 0
        %1008 = vmatprep.subr.mxu0 0.0
        %1009 = vmatpush1.msra.mxu0 0.0
        %1010 = vmatprep.subr.mxu0 0.0
        %1011 = vmatpush1.msra.mxu0 0.0
        %1012 = vmatprep.subr.mxu0 0.0
        %1013 = vmatpush1.msra.mxu0 0.0
        %1014 = vmatprep.subr.mxu0 0.0
        %1015 = vmatpush1.msra.mxu0 0.0
        %1016 = vmatprep.subr.mxu0 0.0
        %1017 = vmatpush1.msra.mxu0 0.0
        %1018 = vmatprep.subr.mxu0 0.0
        %1019 = vmatpush1.msra.mxu0 0.0
        %1020 = vmatprep.subr.mxu0 0.0
        %1021 = vmatpush1.msra.mxu0 0.0
        %1022 = vmatprep.subr.mxu0 0.0
        %1023 = vmatpush1.msra.mxu0 0.0
        %1024 = vmatprep.subr.mxu0 0.0
        %1025 = vmatpush1.msra.mxu0 0.0
        %1026 = vmatprep.subr.mxu0 0.0
        %1027 = vmatpush1.msra.mxu0 0.0
        %1028 = vmatprep.subr.mxu0 0.0
        %1029 = vmatpush1.msra.mxu0 0.0
        %1030 = vmatprep.subr.mxu0 0.0
        %1031 = vmatpush1.msra.mxu0 0.0
        %1032 = vmatprep.subr.mxu0 0.0
        %1033 = vmatpush1.msra.mxu0 %v992
        %1034 = vmatprep.subr.mxu0 0.0
        %1035 = vmatpush1.msra.mxu0 %v991
        %1036 = vmatprep.subr.mxu0 0.0
        %1037 = vmatpush1.msra.mxu0 %v990
        %1038 = vmatprep.subr.mxu0 0.0
        %1039 = vmatpush1.msra.mxu0 %v989
        %1040 = vmatprep.subr.mxu0 0.0
        %1041 = vmatpush2.msra.mxu0 0.0
        %1042 = vmatprep.subr.mxu0 0.0
        %1043 = vmatpush2.msra.mxu0 0.0
        %1044 = vmatprep.subr.mxu0 0.0
        %1045 = vmatpush2.msra.mxu0 0.0
        %1046 = vmatprep.subr.mxu0 0.0
        %1047 = vmatpush2.msra.mxu0 0.0
        %1048 = vmatprep.subr.mxu0 0.0
        %1049 = vmatpush2.msra.mxu0 0.0
        %1050 = vmatprep.subr.mxu0 0.0
        %1051 = vmatpush2.msra.mxu0 0.0
        %1052 = vmatprep.subr.mxu0 0.0
        %1053 = vmatpush2.msra.mxu0 0.0
        %1054 = vmatprep.subr.mxu0 0.0
        %1055 = vmatpush2.msra.mxu0 0.0
        %1056 = vmatprep.subr.mxu0 0.0
        %1057 = vmatpush2.msra.mxu0 0.0
        %1058 = vmatprep.subr.mxu0 0.0
        %1059 = vmatpush2.msra.mxu0 0.0
        %1060 = vmatprep.subr.mxu0 0.0
        %1061 = vmatpush2.msra.mxu0 0.0
        %1062 = vmatprep.subr.mxu0 0.0
        %1063 = vmatpush2.msra.mxu0 0.0
        %1064 = vmatprep.subr.mxu0 0.0
        %1065 = vmatpush2.msra.mxu0 0.0
        %1066 = vmatprep.subr.mxu0 0.0
        %1067 = vmatpush2.msra.mxu0 0.0
        %1068 = vmatprep.subr.mxu0 0.0
        %1069 = vmatpush2.msra.mxu0 0.0
        %1070 = vmatprep.subr.mxu0 0.0
        %1071 = vmatpush2.msra.mxu0 0.0
        %1072 = vmatprep.mubr.f32.mxu0 0.0
        %1073 = vmatmul.mubr.f32.gmra.mxu0 %v1006
        %v1074 = vpop.f32.mrf.mxu0
        %v1075 = vadd.f32 0.0, %v1074
        %v1076 = vpop.f32.mrf.mxu0
        %1077 = vdwg.mxu0
        %1078 = vmatprep.subr.mxu0 0.0
        %1079 = vmatpush1.msra.mxu0 0.0
        %1080 = vmatprep.subr.mxu0 0.0
        %1081 = vmatpush1.msra.mxu0 0.0
        %1082 = vmatprep.subr.mxu0 0.0
        %1083 = vmatpush1.msra.mxu0 0.0
        %1084 = vmatprep.subr.mxu0 0.0
        %1085 = vmatpush1.msra.mxu0 0.0
        %1086 = vmatprep.subr.mxu0 0.0
        %1087 = vmatpush1.msra.mxu0 0.0
        %1088 = vmatprep.subr.mxu0 0.0
        %1089 = vmatpush1.msra.mxu0 0.0
        %1090 = vmatprep.subr.mxu0 0.0
        %1091 = vmatpush1.msra.mxu0 0.0
        %1092 = vmatprep.subr.mxu0 0.0
        %1093 = vmatpush1.msra.mxu0 0.0
        %1094 = vmatprep.subr.mxu0 0.0
        %1095 = vmatpush1.msra.mxu0 0.0
        %1096 = vmatprep.subr.mxu0 0.0
        %1097 = vmatpush1.msra.mxu0 0.0
        %1098 = vmatprep.subr.mxu0 0.0
        %1099 = vmatpush1.msra.mxu0 0.0
        %1100 = vmatprep.subr.mxu0 0.0
        %1101 = vmatpush1.msra.mxu0 0.0
        %1102 = vmatprep.subr.mxu0 0.0
        %1103 = vmatpush1.msra.mxu0 %v996
        %1104 = vmatprep.subr.mxu0 0.0
        %1105 = vmatpush1.msra.mxu0 %v995
        %1106 = vmatprep.subr.mxu0 0.0
        %1107 = vmatpush1.msra.mxu0 %v994
        %1108 = vmatprep.subr.mxu0 0.0
        %1109 = vmatpush1.msra.mxu0 %v993
        %1110 = vmatprep.subr.mxu0 0.0
        %1111 = vmatpush2.msra.mxu0 0.0
        %1112 = vmatprep.subr.mxu0 0.0
        %1113 = vmatpush2.msra.mxu0 0.0
        %1114 = vmatprep.subr.mxu0 0.0
        %1115 = vmatpush2.msra.mxu0 0.0
        %1116 = vmatprep.subr.mxu0 0.0
        %1117 = vmatpush2.msra.mxu0 0.0
        %1118 = vmatprep.subr.mxu0 0.0
        %1119 = vmatpush2.msra.mxu0 0.0
        %1120 = vmatprep.subr.mxu0 0.0
        %1121 = vmatpush2.msra.mxu0 0.0
        %1122 = vmatprep.subr.mxu0 0.0
        %1123 = vmatpush2.msra.mxu0 0.0
        %1124 = vmatprep.subr.mxu0 0.0
        %1125 = vmatpush2.msra.mxu0 0.0
        %1126 = vmatprep.subr.mxu0 0.0
        %1127 = vmatpush2.msra.mxu0 0.0
        %1128 = vmatprep.subr.mxu0 0.0
        %1129 = vmatpush2.msra.mxu0 0.0
        %1130 = vmatprep.subr.mxu0 0.0
        %1131 = vmatpush2.msra.mxu0 0.0
        %1132 = vmatprep.subr.mxu0 0.0
        %1133 = vmatpush2.msra.mxu0 0.0
        %1134 = vmatprep.subr.mxu0 0.0
        %1135 = vmatpush2.msra.mxu0 0.0
        %1136 = vmatprep.subr.mxu0 0.0
        %1137 = vmatpush2.msra.mxu0 0.0
        %1138 = vmatprep.subr.mxu0 0.0
        %1139 = vmatpush2.msra.mxu0 0.0
        %1140 = vmatprep.subr.mxu0 0.0
        %1141 = vmatpush2.msra.mxu0 0.0
        %1142 = vmatprep.mubr.f32.mxu0 0.0
        %1143 = vmatmul.mubr.f32.gmra.mxu0 %v1006
        %v1144 = vpop.f32.mrf.mxu0
        %v1145 = vadd.f32 0.0, %v1144
        %v1146 = vpop.f32.mrf.mxu0
        %1147 = vdwg.mxu0
        %1148 = vmatprep.subr.mxu0 0.0
        %1149 = vmatpush1.msra.mxu0 0.0
        %1150 = vmatprep.subr.mxu0 0.0
        %1151 = vmatpush1.msra.mxu0 0.0
        %1152 = vmatprep.subr.mxu0 0.0
        %1153 = vmatpush1.msra.mxu0 0.0
        %1154 = vmatprep.subr.mxu0 0.0
        %1155 = vmatpush1.msra.mxu0 0.0
        %1156 = vmatprep.subr.mxu0 0.0
        %1157 = vmatpush1.msra.mxu0 0.0
        %1158 = vmatprep.subr.mxu0 0.0
        %1159 = vmatpush1.msra.mxu0 0.0
        %1160 = vmatprep.subr.mxu0 0.0
        %1161 = vmatpush1.msra.mxu0 0.0
        %1162 = vmatprep.subr.mxu0 0.0
        %1163 = vmatpush1.msra.mxu0 0.0
        %1164 = vmatprep.subr.mxu0 0.0
        %1165 = vmatpush1.msra.mxu0 0.0
        %1166 = vmatprep.subr.mxu0 0.0
        %1167 = vmatpush1.msra.mxu0 0.0
        %1168 = vmatprep.subr.mxu0 0.0
        %1169 = vmatpush1.msra.mxu0 0.0
        %1170 = vmatprep.subr.mxu0 0.0
        %1171 = vmatpush1.msra.mxu0 0.0
        %1172 = vmatprep.subr.mxu0 0.0
        %1173 = vmatpush1.msra.mxu0 %v1000
        %1174 = vmatprep.subr.mxu0 0.0
        %1175 = vmatpush1.msra.mxu0 %v999
        %1176 = vmatprep.subr.mxu0 0.0
        %1177 = vmatpush1.msra.mxu0 %v998
        %1178 = vmatprep.subr.mxu0 0.0
        %1179 = vmatpush1.msra.mxu0 %v997
        %1180 = vmatprep.subr.mxu0 0.0
        %1181 = vmatpush2.msra.mxu0 0.0
        %1182 = vmatprep.subr.mxu0 0.0
        %1183 = vmatpush2.msra.mxu0 0.0
        %1184 = vmatprep.subr.mxu0 0.0
        %1185 = vmatpush2.msra.mxu0 0.0
        %1186 = vmatprep.subr.mxu0 0.0
        %1187 = vmatpush2.msra.mxu0 0.0
        %1188 = vmatprep.subr.mxu0 0.0
        %1189 = vmatpush2.msra.mxu0 0.0
        %1190 = vmatprep.subr.mxu0 0.0
        %1191 = vmatpush2.msra.mxu0 0.0
        %1192 = vmatprep.subr.mxu0 0.0
        %1193 = vmatpush2.msra.mxu0 0.0
        %1194 = vmatprep.subr.mxu0 0.0
        %1195 = vmatpush2.msra.mxu0 0.0
        %1196 = vmatprep.subr.mxu0 0.0
        %1197 = vmatpush2.msra.mxu0 0.0
        %1198 = vmatprep.subr.mxu0 0.0
        %1199 = vmatpush2.msra.mxu0 0.0
        %1200 = vmatprep.subr.mxu0 0.0
        %1201 = vmatpush2.msra.mxu0 0.0
        %1202 = vmatprep.subr.mxu0 0.0
        %1203 = vmatpush2.msra.mxu0 0.0
        %1204 = vmatprep.subr.mxu0 0.0
        %1205 = vmatpush2.msra.mxu0 0.0
        %1206 = vmatprep.subr.mxu0 0.0
        %1207 = vmatpush2.msra.mxu0 0.0
        %1208 = vmatprep.subr.mxu0 0.0
        %1209 = vmatpush2.msra.mxu0 0.0
        %1210 = vmatprep.subr.mxu0 0.0
        %1211 = vmatpush2.msra.mxu0 0.0
        %1212 = vmatprep.mubr.f32.mxu0 0.0
        %1213 = vmatmul.mubr.f32.gmra.mxu0 %v1006
        %v1214 = vpop.f32.mrf.mxu0
        %v1215 = vadd.f32 0.0, %v1214
        %v1216 = vpop.f32.mrf.mxu0
        %1217 = vdwg.mxu0
        %1218 = vmatprep.subr.mxu0 0.0
        %1219 = vmatpush1.msra.mxu0 0.0
        %1220 = vmatprep.subr.mxu0 0.0
        %1221 = vmatpush1.msra.mxu0 0.0
        %1222 = vmatprep.subr.mxu0 0.0
        %1223 = vmatpush1.msra.mxu0 0.0
        %1224 = vmatprep.subr.mxu0 0.0
        %1225 = vmatpush1.msra.mxu0 0.0
        %1226 = vmatprep.subr.mxu0 0.0
        %1227 = vmatpush1.msra.mxu0 0.0
        %1228 = vmatprep.subr.mxu0 0.0
        %1229 = vmatpush1.msra.mxu0 0.0
        %1230 = vmatprep.subr.mxu0 0.0
        %1231 = vmatpush1.msra.mxu0 0.0
        %1232 = vmatprep.subr.mxu0 0.0
        %1233 = vmatpush1.msra.mxu0 0.0
        %1234 = vmatprep.subr.mxu0 0.0
        %1235 = vmatpush1.msra.mxu0 0.0
        %1236 = vmatprep.subr.mxu0 0.0
        %1237 = vmatpush1.msra.mxu0 0.0
        %1238 = vmatprep.subr.mxu0 0.0
        %1239 = vmatpush1.msra.mxu0 0.0
        %1240 = vmatprep.subr.mxu0 0.0
        %1241 = vmatpush1.msra.mxu0 0.0
        %1242 = vmatprep.subr.mxu0 0.0
        %1243 = vmatpush1.msra.mxu0 %v1004
        %1244 = vmatprep.subr.mxu0 0.0
        %1245 = vmatpush1.msra.mxu0 %v1003
        %1246 = vmatprep.subr.mxu0 0.0
        %1247 = vmatpush1.msra.mxu0 %v1002
        %1248 = vmatprep.subr.mxu0 0.0
        %1249 = vmatpush1.msra.mxu0 %v1001
        %1250 = vmatprep.subr.mxu0 0.0
        %1251 = vmatpush2.msra.mxu0 0.0
        %1252 = vmatprep.subr.mxu0 0.0
        %1253 = vmatpush2.msra.mxu0 0.0
        %1254 = vmatprep.subr.mxu0 0.0
        %1255 = vmatpush2.msra.mxu0 0.0
        %1256 = vmatprep.subr.mxu0 0.0
        %1257 = vmatpush2.msra.mxu0 0.0
        %1258 = vmatprep.subr.mxu0 0.0
        %1259 = vmatpush2.msra.mxu0 0.0
        %1260 = vmatprep.subr.mxu0 0.0
        %1261 = vmatpush2.msra.mxu0 0.0
        %1262 = vmatprep.subr.mxu0 0.0
        %1263 = vmatpush2.msra.mxu0 0.0
        %1264 = vmatprep.subr.mxu0 0.0
        %1265 = vmatpush2.msra.mxu0 0.0
        %1266 = vmatprep.subr.mxu0 0.0
        %1267 = vmatpush2.msra.mxu0 0.0
        %1268 = vmatprep.subr.mxu0 0.0
        %1269 = vmatpush2.msra.mxu0 0.0
        %1270 = vmatprep.subr.mxu0 0.0
        %1271 = vmatpush2.msra.mxu0 0.0
        %1272 = vmatprep.subr.mxu0 0.0
        %1273 = vmatpush2.msra.mxu0 0.0
        %1274 = vmatprep.subr.mxu0 0.0
        %1275 = vmatpush2.msra.mxu0 0.0
        %1276 = vmatprep.subr.mxu0 0.0
        %1277 = vmatpush2.msra.mxu0 0.0
        %1278 = vmatprep.subr.mxu0 0.0
        %1279 = vmatpush2.msra.mxu0 0.0
        %1280 = vmatprep.subr.mxu0 0.0
        %1281 = vmatpush2.msra.mxu0 0.0
        %1282 = vmatprep.mubr.f32.mxu0 0.0
        %1283 = vmatmul.mubr.f32.gmra.mxu0 %v1006
        %v1284 = vpop.f32.mrf.mxu0
        %v1285 = vadd.f32 0.0, %v1284
        %v1286 = vpop.f32.mrf.mxu0
        %1287 = vdwg.mxu0
        %vm1288 = vcmask 64512
        %v1290 = vsel %vm1288, %v477, 0
        %v1293 = vsel %vm1288, %v776, 0
        %1295 = vmatprep.subr.mxu0 0.0
        %1296 = vmatpush1.xpose.msra.mxu0 0.0
        %1297 = vmatprep.subr.mxu0 0.0
        %1298 = vmatpush1.xpose.msra.mxu0 0.0
        %1299 = vmatprep.subr.mxu0 0.0
        %1300 = vmatpush1.xpose.msra.mxu0 0.0
        %1301 = vmatprep.subr.mxu0 0.0
        %1302 = vmatpush1.xpose.msra.mxu0 0.0
        %1303 = vmatprep.subr.mxu0 0.0
        %1304 = vmatpush1.xpose.msra.mxu0 0.0
        %1305 = vmatprep.subr.mxu0 0.0
        %1306 = vmatpush1.xpose.msra.mxu0 0.0
        %1307 = vmatprep.subr.mxu0 0.0
        %1308 = vmatpush1.xpose.msra.mxu0 0.0
        %1309 = vmatprep.subr.mxu0 0.0
        %1310 = vmatpush1.xpose.msra.mxu0 0.0
        %1311 = vmatprep.subr.mxu0 0.0
        %1312 = vmatpush1.xpose.msra.mxu0 0.0
        %1313 = vmatprep.subr.mxu0 0.0
        %1314 = vmatpush1.xpose.msra.mxu0 0.0
        %1315 = vmatprep.subr.mxu0 0.0
        %1316 = vmatpush1.xpose.msra.mxu0 0.0
        %1317 = vmatprep.subr.mxu0 0.0
        %1318 = vmatpush1.xpose.msra.mxu0 0.0
        %1319 = vmatprep.subr.mxu0 0.0
        %1320 = vmatpush1.xpose.msra.mxu0 0.0
        %1321 = vmatprep.subr.mxu0 0.0
        %1322 = vmatpush1.xpose.msra.mxu0 0.0
        %1323 = vmatprep.subr.mxu0 0.0
        %1324 = vmatpush1.xpose.msra.mxu0 0.0
        %1325 = vmatprep.subr.mxu0 0.0
        %1326 = vmatpush1.xpose.msra.mxu0 %v1293
        %1327 = vmatprep.subr.mxu0 0.0
        %1328 = vmatpush2.xpose.msra.mxu0 0.0
        %1329 = vmatprep.subr.mxu0 0.0
        %1330 = vmatpush2.xpose.msra.mxu0 0.0
        %1331 = vmatprep.subr.mxu0 0.0
        %1332 = vmatpush2.xpose.msra.mxu0 0.0
        %1333 = vmatprep.subr.mxu0 0.0
        %1334 = vmatpush2.xpose.msra.mxu0 0.0
        %1335 = vmatprep.subr.mxu0 0.0
        %1336 = vmatpush2.xpose.msra.mxu0 0.0
        %1337 = vmatprep.subr.mxu0 0.0
        %1338 = vmatpush2.xpose.msra.mxu0 0.0
        %1339 = vmatprep.subr.mxu0 0.0
        %1340 = vmatpush2.xpose.msra.mxu0 0.0
        %1341 = vmatprep.subr.mxu0 0.0
        %1342 = vmatpush2.xpose.msra.mxu0 0.0
        %1343 = vmatprep.subr.mxu0 0.0
        %1344 = vmatpush2.xpose.msra.mxu0 0.0
        %1345 = vmatprep.subr.mxu0 0.0
        %1346 = vmatpush2.xpose.msra.mxu0 0.0
        %1347 = vmatprep.subr.mxu0 0.0
        %1348 = vmatpush2.xpose.msra.mxu0 0.0
        %1349 = vmatprep.subr.mxu0 0.0
        %1350 = vmatpush2.xpose.msra.mxu0 0.0
        %1351 = vmatprep.subr.mxu0 0.0
        %1352 = vmatpush2.xpose.msra.mxu0 0.0
        %1353 = vmatprep.subr.mxu0 0.0
        %1354 = vmatpush2.xpose.msra.mxu0 0.0
        %1355 = vmatprep.subr.mxu0 0.0
        %1356 = vmatpush2.xpose.msra.mxu0 0.0
        %1357 = vmatprep.subr.mxu0 0.0
        %1358 = vmatpush2.xpose.msra.mxu0 0.0
        %1359 = vmatprep.mubr.f32.mxu0 0.0
        %1360 = vmatmul.mubr.f32.gmra.mxu0 %v1290
        %v1361 = vpop.f32.mrf.mxu0
        %v1362 = vadd.f32 0.0, %v1361
        %v1363 = vpop.f32.mrf.mxu0
        %1364 = vdwg.mxu0
        %v1366 = vsel %vm1288, %v547, 0
        %v1369 = vsel %vm1288, %v846, 0
        %1371 = vmatprep.subr.mxu0 0.0
        %1372 = vmatpush1.xpose.msra.mxu0 0.0
        %1373 = vmatprep.subr.mxu0 0.0
        %1374 = vmatpush1.xpose.msra.mxu0 0.0
        %1375 = vmatprep.subr.mxu0 0.0
        %1376 = vmatpush1.xpose.msra.mxu0 0.0
        %1377 = vmatprep.subr.mxu0 0.0
        %1378 = vmatpush1.xpose.msra.mxu0 0.0
        %1379 = vmatprep.subr.mxu0 0.0
        %1380 = vmatpush1.xpose.msra.mxu0 0.0
        %1381 = vmatprep.subr.mxu0 0.0
        %1382 = vmatpush1.xpose.msra.mxu0 0.0
        %1383 = vmatprep.subr.mxu0 0.0
        %1384 = vmatpush1.xpose.msra.mxu0 0.0
        %1385 = vmatprep.subr.mxu0 0.0
        %1386 = vmatpush1.xpose.msra.mxu0 0.0
        %1387 = vmatprep.subr.mxu0 0.0
        %1388 = vmatpush1.xpose.msra.mxu0 0.0
        %1389 = vmatprep.subr.mxu0 0.0
        %1390 = vmatpush1.xpose.msra.mxu0 0.0
        %1391 = vmatprep.subr.mxu0 0.0
        %1392 = vmatpush1.xpose.msra.mxu0 0.0
        %1393 = vmatprep.subr.mxu0 0.0
        %1394 = vmatpush1.xpose.msra.mxu0 0.0
        %1395 = vmatprep.subr.mxu0 0.0
        %1396 = vmatpush1.xpose.msra.mxu0 0.0
        %1397 = vmatprep.subr.mxu0 0.0
        %1398 = vmatpush1.xpose.msra.mxu0 0.0
        %1399 = vmatprep.subr.mxu0 0.0
        %1400 = vmatpush1.xpose.msra.mxu0 0.0
        %1401 = vmatprep.subr.mxu0 0.0
        %1402 = vmatpush1.xpose.msra.mxu0 %v1369
        %1403 = vmatprep.subr.mxu0 0.0
        %1404 = vmatpush2.xpose.msra.mxu0 0.0
        %1405 = vmatprep.subr.mxu0 0.0
        %1406 = vmatpush2.xpose.msra.mxu0 0.0
        %1407 = vmatprep.subr.mxu0 0.0
        %1408 = vmatpush2.xpose.msra.mxu0 0.0
        %1409 = vmatprep.subr.mxu0 0.0
        %1410 = vmatpush2.xpose.msra.mxu0 0.0
        %1411 = vmatprep.subr.mxu0 0.0
        %1412 = vmatpush2.xpose.msra.mxu0 0.0
        %1413 = vmatprep.subr.mxu0 0.0
        %1414 = vmatpush2.xpose.msra.mxu0 0.0
        %1415 = vmatprep.subr.mxu0 0.0
        %1416 = vmatpush2.xpose.msra.mxu0 0.0
        %1417 = vmatprep.subr.mxu0 0.0
        %1418 = vmatpush2.xpose.msra.mxu0 0.0
        %1419 = vmatprep.subr.mxu0 0.0
        %1420 = vmatpush2.xpose.msra.mxu0 0.0
        %1421 = vmatprep.subr.mxu0 0.0
        %1422 = vmatpush2.xpose.msra.mxu0 0.0
        %1423 = vmatprep.subr.mxu0 0.0
        %1424 = vmatpush2.xpose.msra.mxu0 0.0
        %1425 = vmatprep.subr.mxu0 0.0
        %1426 = vmatpush2.xpose.msra.mxu0 0.0
        %1427 = vmatprep.subr.mxu0 0.0
        %1428 = vmatpush2.xpose.msra.mxu0 0.0
        %1429 = vmatprep.subr.mxu0 0.0
        %1430 = vmatpush2.xpose.msra.mxu0 0.0
        %1431 = vmatprep.subr.mxu0 0.0
        %1432 = vmatpush2.xpose.msra.mxu0 0.0
        %1433 = vmatprep.subr.mxu0 0.0
        %1434 = vmatpush2.xpose.msra.mxu0 0.0
        %1435 = vmatprep.mubr.f32.mxu0 0.0
        %1436 = vmatmul.mubr.f32.gmra.mxu0 %v1366
        %v1437 = vpop.f32.mrf.mxu0
        %v1438 = vadd.f32 0.0, %v1437
        %v1439 = vpop.f32.mrf.mxu0
        %1440 = vdwg.mxu0
        %v1442 = vsel %vm1288, %v617, 0
        %v1445 = vsel %vm1288, %v916, 0
        %1447 = vmatprep.subr.mxu0 0.0
        %1448 = vmatpush1.xpose.msra.mxu0 0.0
        %1449 = vmatprep.subr.mxu0 0.0
        %1450 = vmatpush1.xpose.msra.mxu0 0.0
        %1451 = vmatprep.subr.mxu0 0.0
        %1452 = vmatpush1.xpose.msra.mxu0 0.0
        %1453 = vmatprep.subr.mxu0 0.0
        %1454 = vmatpush1.xpose.msra.mxu0 0.0
        %1455 = vmatprep.subr.mxu0 0.0
        %1456 = vmatpush1.xpose.msra.mxu0 0.0
        %1457 = vmatprep.subr.mxu0 0.0
        %1458 = vmatpush1.xpose.msra.mxu0 0.0
        %1459 = vmatprep.subr.mxu0 0.0
        %1460 = vmatpush1.xpose.msra.mxu0 0.0
        %1461 = vmatprep.subr.mxu0 0.0
        %1462 = vmatpush1.xpose.msra.mxu0 0.0
        %1463 = vmatprep.subr.mxu0 0.0
        %1464 = vmatpush1.xpose.msra.mxu0 0.0
        %1465 = vmatprep.subr.mxu0 0.0
        %1466 = vmatpush1.xpose.msra.mxu0 0.0
        %1467 = vmatprep.subr.mxu0 0.0
        %1468 = vmatpush1.xpose.msra.mxu0 0.0
        %1469 = vmatprep.subr.mxu0 0.0
        %1470 = vmatpush1.xpose.msra.mxu0 0.0
        %1471 = vmatprep.subr.mxu0 0.0
        %1472 = vmatpush1.xpose.msra.mxu0 0.0
        %1473 = vmatprep.subr.mxu0 0.0
        %1474 = vmatpush1.xpose.msra.mxu0 0.0
        %1475 = vmatprep.subr.mxu0 0.0
        %1476 = vmatpush1.xpose.msra.mxu0 0.0
        %1477 = vmatprep.subr.mxu0 0.0
        %1478 = vmatpush1.xpose.msra.mxu0 %v1445
        %1479 = vmatprep.subr.mxu0 0.0
        %1480 = vmatpush2.xpose.msra.mxu0 0.0
        %1481 = vmatprep.subr.mxu0 0.0
        %1482 = vmatpush2.xpose.msra.mxu0 0.0
        %1483 = vmatprep.subr.mxu0 0.0
        %1484 = vmatpush2.xpose.msra.mxu0 0.0
        %1485 = vmatprep.subr.mxu0 0.0
        %1486 = vmatpush2.xpose.msra.mxu0 0.0
        %1487 = vmatprep.subr.mxu0 0.0
        %1488 = vmatpush2.xpose.msra.mxu0 0.0
        %1489 = vmatprep.subr.mxu0 0.0
        %1490 = vmatpush2.xpose.msra.mxu0 0.0
        %1491 = vmatprep.subr.mxu0 0.0
        %1492 = vmatpush2.xpose.msra.mxu0 0.0
        %1493 = vmatprep.subr.mxu0 0.0
        %1494 = vmatpush2.xpose.msra.mxu0 0.0
        %1495 = vmatprep.subr.mxu0 0.0
        %1496 = vmatpush2.xpose.msra.mxu0 0.0
        %1497 = vmatprep.subr.mxu0 0.0
        %1498 = vmatpush2.xpose.msra.mxu0 0.0
        %1499 = vmatprep.subr.mxu0 0.0
        %1500 = vmatpush2.xpose.msra.mxu0 0.0
        %1501 = vmatprep.subr.mxu0 0.0
        %1502 = vmatpush2.xpose.msra.mxu0 0.0
        %1503 = vmatprep.subr.mxu0 0.0
        %1504 = vmatpush2.xpose.msra.mxu0 0.0
        %1505 = vmatprep.subr.mxu0 0.0
        %1506 = vmatpush2.xpose.msra.mxu0 0.0
        %1507 = vmatprep.subr.mxu0 0.0
        %1508 = vmatpush2.xpose.msra.mxu0 0.0
        %1509 = vmatprep.subr.mxu0 0.0
        %1510 = vmatpush2.xpose.msra.mxu0 0.0
        %1511 = vmatprep.mubr.f32.mxu0 0.0
        %1512 = vmatmul.mubr.f32.gmra.mxu0 %v1442
        %v1513 = vpop.f32.mrf.mxu0
        %v1514 = vadd.f32 0.0, %v1513
        %v1515 = vpop.f32.mrf.mxu0
        %1516 = vdwg.mxu0
        %v1518 = vsel %vm1288, %v687, 0
        %v1521 = vsel %vm1288, %v986, 0
        %1523 = vmatprep.subr.mxu0 0.0
        %1524 = vmatpush1.xpose.msra.mxu0 0.0
        %1525 = vmatprep.subr.mxu0 0.0
        %1526 = vmatpush1.xpose.msra.mxu0 0.0
        %1527 = vmatprep.subr.mxu0 0.0
        %1528 = vmatpush1.xpose.msra.mxu0 0.0
        %1529 = vmatprep.subr.mxu0 0.0
        %1530 = vmatpush1.xpose.msra.mxu0 0.0
        %1531 = vmatprep.subr.mxu0 0.0
        %1532 = vmatpush1.xpose.msra.mxu0 0.0
        %1533 = vmatprep.subr.mxu0 0.0
        %1534 = vmatpush1.xpose.msra.mxu0 0.0
        %1535 = vmatprep.subr.mxu0 0.0
        %1536 = vmatpush1.xpose.msra.mxu0 0.0
        %1537 = vmatprep.subr.mxu0 0.0
        %1538 = vmatpush1.xpose.msra.mxu0 0.0
        %1539 = vmatprep.subr.mxu0 0.0
        %1540 = vmatpush1.xpose.msra.mxu0 0.0
        %1541 = vmatprep.subr.mxu0 0.0
        %1542 = vmatpush1.xpose.msra.mxu0 0.0
        %1543 = vmatprep.subr.mxu0 0.0
        %1544 = vmatpush1.xpose.msra.mxu0 0.0
        %1545 = vmatprep.subr.mxu0 0.0
        %1546 = vmatpush1.xpose.msra.mxu0 0.0
        %1547 = vmatprep.subr.mxu0 0.0
        %1548 = vmatpush1.xpose.msra.mxu0 0.0
        %1549 = vmatprep.subr.mxu0 0.0
        %1550 = vmatpush1.xpose.msra.mxu0 0.0
        %1551 = vmatprep.subr.mxu0 0.0
        %1552 = vmatpush1.xpose.msra.mxu0 0.0
        %1553 = vmatprep.subr.mxu0 0.0
        %1554 = vmatpush1.xpose.msra.mxu0 %v1521
        %1555 = vmatprep.subr.mxu0 0.0
        %1556 = vmatpush2.xpose.msra.mxu0 0.0
        %1557 = vmatprep.subr.mxu0 0.0
        %1558 = vmatpush2.xpose.msra.mxu0 0.0
        %1559 = vmatprep.subr.mxu0 0.0
        %1560 = vmatpush2.xpose.msra.mxu0 0.0
        %1561 = vmatprep.subr.mxu0 0.0
        %1562 = vmatpush2.xpose.msra.mxu0 0.0
        %1563 = vmatprep.subr.mxu0 0.0
        %1564 = vmatpush2.xpose.msra.mxu0 0.0
        %1565 = vmatprep.subr.mxu0 0.0
        %1566 = vmatpush2.xpose.msra.mxu0 0.0
        %1567 = vmatprep.subr.mxu0 0.0
        %1568 = vmatpush2.xpose.msra.mxu0 0.0
        %1569 = vmatprep.subr.mxu0 0.0
        %1570 = vmatpush2.xpose.msra.mxu0 0.0
        %1571 = vmatprep.subr.mxu0 0.0
        %1572 = vmatpush2.xpose.msra.mxu0 0.0
        %1573 = vmatprep.subr.mxu0 0.0
        %1574 = vmatpush2.xpose.msra.mxu0 0.0
        %1575 = vmatprep.subr.mxu0 0.0
        %1576 = vmatpush2.xpose.msra.mxu0 0.0
        %1577 = vmatprep.subr.mxu0 0.0
        %1578 = vmatpush2.xpose.msra.mxu0 0.0
        %1579 = vmatprep.subr.mxu0 0.0
        %1580 = vmatpush2.xpose.msra.mxu0 0.0
        %1581 = vmatprep.subr.mxu0 0.0
        %1582 = vmatpush2.xpose.msra.mxu0 0.0
        %1583 = vmatprep.subr.mxu0 0.0
        %1584 = vmatpush2.xpose.msra.mxu0 0.0
        %1585 = vmatprep.subr.mxu0 0.0
        %1586 = vmatpush2.xpose.msra.mxu0 0.0
        %1587 = vmatprep.mubr.f32.mxu0 0.0
        %1588 = vmatmul.mubr.f32.gmra.mxu0 %v1518
        %v1589 = vpop.f32.mrf.mxu0
        %v1590 = vadd.f32 0.0, %v1589
        %v1591 = vpop.f32.mrf.mxu0
        %1592 = vdwg.mxu0
        %v1593 = vmul.f32 %v1362, 0.35355338
        %v1594 = vmul.f32 %v1438, 0.35355338
        %v1595 = vmul.f32 %v1514, 0.35355338
        %v1596 = vmul.f32 %v1590, 0.35355338
        %v1597 = vsel %vm1288, %v1593, -inf
        %1598 = vmax.xlane.f32.xlu0 %v1597
        %v1599 = vpop.xlane.xlu0 %1598
        %v1600 = vsel %vm1288, %v1594, -inf
        %1601 = vmax.xlane.f32.xlu0 %v1600
        %v1602 = vpop.xlane.xlu0 %1601
        %v1603 = vsel %vm1288, %v1595, -inf
        %1604 = vmax.xlane.f32.xlu0 %v1603
        %v1605 = vpop.xlane.xlu0 %1604
        %v1606 = vsel %vm1288, %v1596, -inf
        %1607 = vmax.xlane.f32.xlu0 %v1606
        %v1608 = vpop.xlane.xlu0 %1607
        %v1609 = vsub.f32 %v1593, %v1599
        %v1610 = vsub.f32 %v1594, %v1602
        %v1611 = vsub.f32 %v1595, %v1605
        %v1612 = vsub.f32 %v1596, %v1608
        %v1613 = vmul.f32 %v1609, 1.442695
        %v1614 = vpow.pop %v1613
        %v1615 = vmul.f32 %v1610, 1.442695
        %v1616 = vpow.pop %v1615
        %v1617 = vmul.f32 %v1611, 1.442695
        %v1618 = vpow.pop %v1617
        %v1619 = vmul.f32 %v1612, 1.442695
        %v1620 = vpow.pop %v1619
        %v1621 = vsel %vm1288, %v1614, 0.0
        %1622 = vadd.xlane.f32.xlu0 %v1621
        %v1623 = vpop.xlane.xlu0 %1622
        %v1624 = vsel %vm1288, %v1616, 0.0
        %1625 = vadd.xlane.f32.xlu0 %v1624
        %v1626 = vpop.xlane.xlu0 %1625
        %v1627 = vsel %vm1288, %v1618, 0.0
        %1628 = vadd.xlane.f32.xlu0 %v1627
        %v1629 = vpop.xlane.xlu0 %1628
        %v1630 = vsel %vm1288, %v1620, 0.0
        %1631 = vadd.xlane.f32.xlu0 %v1630
        %v1632 = vpop.xlane.xlu0 %1631
        %v1633 = vrcp.pop %v1623
        %v1634 = vrcp.pop %v1626
        %v1635 = vrcp.pop %v1629
        %v1636 = vrcp.pop %v1632
        %v1637 = vmul.f32 %v1614, %v1633
        %v1638 = vmul.f32 %v1616, %v1634
        %v1639 = vmul.f32 %v1618, %v1635
        %v1640 = vmul.f32 %v1620, %v1636
        %v1642 = vsel %vm1288, %v1637, 0
        %1644 = vmatprep.subr.mxu0 0.0
        %1645 = vmatpush1.msra.mxu0 0.0
        %1646 = vmatprep.subr.mxu0 0.0
        %1647 = vmatpush1.msra.mxu0 0.0
        %1648 = vmatprep.subr.mxu0 0.0
        %1649 = vmatpush1.msra.mxu0 0.0
        %1650 = vmatprep.subr.mxu0 0.0
        %1651 = vmatpush1.msra.mxu0 0.0
        %1652 = vmatprep.subr.mxu0 0.0
        %1653 = vmatpush1.msra.mxu0 0.0
        %1654 = vmatprep.subr.mxu0 0.0
        %1655 = vmatpush1.msra.mxu0 0.0
        %1656 = vmatprep.subr.mxu0 0.0
        %1657 = vmatpush1.msra.mxu0 0.0
        %1658 = vmatprep.subr.mxu0 0.0
        %1659 = vmatpush1.msra.mxu0 0.0
        %1660 = vmatprep.subr.mxu0 0.0
        %1661 = vmatpush1.msra.mxu0 0.0
        %1662 = vmatprep.subr.mxu0 0.0
        %1663 = vmatpush1.msra.mxu0 0.0
        %1664 = vmatprep.subr.mxu0 0.0
        %1665 = vmatpush1.msra.mxu0 0.0
        %1666 = vmatprep.subr.mxu0 0.0
        %1667 = vmatpush1.msra.mxu0 0.0
        %1668 = vmatprep.subr.mxu0 0.0
        %1669 = vmatpush1.msra.mxu0 0.0
        %1670 = vmatprep.subr.mxu0 0.0
        %1671 = vmatpush1.msra.mxu0 0.0
        %1672 = vmatprep.subr.mxu0 0.0
        %1673 = vmatpush1.msra.mxu0 0.0
        %1674 = vmatprep.subr.mxu0 0.0
        %1675 = vmatpush1.msra.mxu0 %v1075
        %1676 = vmatprep.subr.mxu0 0.0
        %1677 = vmatpush2.msra.mxu0 0.0
        %1678 = vmatprep.subr.mxu0 0.0
        %1679 = vmatpush2.msra.mxu0 0.0
        %1680 = vmatprep.subr.mxu0 0.0
        %1681 = vmatpush2.msra.mxu0 0.0
        %1682 = vmatprep.subr.mxu0 0.0
        %1683 = vmatpush2.msra.mxu0 0.0
        %1684 = vmatprep.subr.mxu0 0.0
        %1685 = vmatpush2.msra.mxu0 0.0
        %1686 = vmatprep.subr.mxu0 0.0
        %1687 = vmatpush2.msra.mxu0 0.0
        %1688 = vmatprep.subr.mxu0 0.0
        %1689 = vmatpush2.msra.mxu0 0.0
        %1690 = vmatprep.subr.mxu0 0.0
        %1691 = vmatpush2.msra.mxu0 0.0
        %1692 = vmatprep.subr.mxu0 0.0
        %1693 = vmatpush2.msra.mxu0 0.0
        %1694 = vmatprep.subr.mxu0 0.0
        %1695 = vmatpush2.msra.mxu0 0.0
        %1696 = vmatprep.subr.mxu0 0.0
        %1697 = vmatpush2.msra.mxu0 0.0
        %1698 = vmatprep.subr.mxu0 0.0
        %1699 = vmatpush2.msra.mxu0 0.0
        %1700 = vmatprep.subr.mxu0 0.0
        %1701 = vmatpush2.msra.mxu0 0.0
        %1702 = vmatprep.subr.mxu0 0.0
        %1703 = vmatpush2.msra.mxu0 0.0
        %1704 = vmatprep.subr.mxu0 0.0
        %1705 = vmatpush2.msra.mxu0 0.0
        %1706 = vmatprep.subr.mxu0 0.0
        %1707 = vmatpush2.msra.mxu0 0.0
        %1708 = vmatprep.mubr.f32.mxu0 0.0
        %1709 = vmatmul.mubr.f32.gmra.mxu0 %v1642
        %v1710 = vpop.f32.mrf.mxu0
        %v1711 = vadd.f32 0.0, %v1710
        %v1712 = vpop.f32.mrf.mxu0
        %1713 = vdwg.mxu0
        %v1715 = vsel %vm1288, %v1638, 0
        %1717 = vmatprep.subr.mxu0 0.0
        %1718 = vmatpush1.msra.mxu0 0.0
        %1719 = vmatprep.subr.mxu0 0.0
        %1720 = vmatpush1.msra.mxu0 0.0
        %1721 = vmatprep.subr.mxu0 0.0
        %1722 = vmatpush1.msra.mxu0 0.0
        %1723 = vmatprep.subr.mxu0 0.0
        %1724 = vmatpush1.msra.mxu0 0.0
        %1725 = vmatprep.subr.mxu0 0.0
        %1726 = vmatpush1.msra.mxu0 0.0
        %1727 = vmatprep.subr.mxu0 0.0
        %1728 = vmatpush1.msra.mxu0 0.0
        %1729 = vmatprep.subr.mxu0 0.0
        %1730 = vmatpush1.msra.mxu0 0.0
        %1731 = vmatprep.subr.mxu0 0.0
        %1732 = vmatpush1.msra.mxu0 0.0
        %1733 = vmatprep.subr.mxu0 0.0
        %1734 = vmatpush1.msra.mxu0 0.0
        %1735 = vmatprep.subr.mxu0 0.0
        %1736 = vmatpush1.msra.mxu0 0.0
        %1737 = vmatprep.subr.mxu0 0.0
        %1738 = vmatpush1.msra.mxu0 0.0
        %1739 = vmatprep.subr.mxu0 0.0
        %1740 = vmatpush1.msra.mxu0 0.0
        %1741 = vmatprep.subr.mxu0 0.0
        %1742 = vmatpush1.msra.mxu0 0.0
        %1743 = vmatprep.subr.mxu0 0.0
        %1744 = vmatpush1.msra.mxu0 0.0
        %1745 = vmatprep.subr.mxu0 0.0
        %1746 = vmatpush1.msra.mxu0 0.0
        %1747 = vmatprep.subr.mxu0 0.0
        %1748 = vmatpush1.msra.mxu0 %v1145
        %1749 = vmatprep.subr.mxu0 0.0
        %1750 = vmatpush2.msra.mxu0 0.0
        %1751 = vmatprep.subr.mxu0 0.0
        %1752 = vmatpush2.msra.mxu0 0.0
        %1753 = vmatprep.subr.mxu0 0.0
        %1754 = vmatpush2.msra.mxu0 0.0
        %1755 = vmatprep.subr.mxu0 0.0
        %1756 = vmatpush2.msra.mxu0 0.0
        %1757 = vmatprep.subr.mxu0 0.0
        %1758 = vmatpush2.msra.mxu0 0.0
        %1759 = vmatprep.subr.mxu0 0.0
        %1760 = vmatpush2.msra.mxu0 0.0
        %1761 = vmatprep.subr.mxu0 0.0
        %1762 = vmatpush2.msra.mxu0 0.0
        %1763 = vmatprep.subr.mxu0 0.0
        %1764 = vmatpush2.msra.mxu0 0.0
        %1765 = vmatprep.subr.mxu0 0.0
        %1766 = vmatpush2.msra.mxu0 0.0
        %1767 = vmatprep.subr.mxu0 0.0
        %1768 = vmatpush2.msra.mxu0 0.0
        %1769 = vmatprep.subr.mxu0 0.0
        %1770 = vmatpush2.msra.mxu0 0.0
        %1771 = vmatprep.subr.mxu0 0.0
        %1772 = vmatpush2.msra.mxu0 0.0
        %1773 = vmatprep.subr.mxu0 0.0
        %1774 = vmatpush2.msra.mxu0 0.0
        %1775 = vmatprep.subr.mxu0 0.0
        %1776 = vmatpush2.msra.mxu0 0.0
        %1777 = vmatprep.subr.mxu0 0.0
        %1778 = vmatpush2.msra.mxu0 0.0
        %1779 = vmatprep.subr.mxu0 0.0
        %1780 = vmatpush2.msra.mxu0 0.0
        %1781 = vmatprep.mubr.f32.mxu0 0.0
        %1782 = vmatmul.mubr.f32.gmra.mxu0 %v1715
        %v1783 = vpop.f32.mrf.mxu0
        %v1784 = vadd.f32 0.0, %v1783
        %v1785 = vpop.f32.mrf.mxu0
        %1786 = vdwg.mxu0
        %v1788 = vsel %vm1288, %v1639, 0
        %1790 = vmatprep.subr.mxu0 0.0
        %1791 = vmatpush1.msra.mxu0 0.0
        %1792 = vmatprep.subr.mxu0 0.0
        %1793 = vmatpush1.msra.mxu0 0.0
        %1794 = vmatprep.subr.mxu0 0.0
        %1795 = vmatpush1.msra.mxu0 0.0
        %1796 = vmatprep.subr.mxu0 0.0
        %1797 = vmatpush1.msra.mxu0 0.0
        %1798 = vmatprep.subr.mxu0 0.0
        %1799 = vmatpush1.msra.mxu0 0.0
        %1800 = vmatprep.subr.mxu0 0.0
        %1801 = vmatpush1.msra.mxu0 0.0
        %1802 = vmatprep.subr.mxu0 0.0
        %1803 = vmatpush1.msra.mxu0 0.0
        %1804 = vmatprep.subr.mxu0 0.0
        %1805 = vmatpush1.msra.mxu0 0.0
        %1806 = vmatprep.subr.mxu0 0.0
        %1807 = vmatpush1.msra.mxu0 0.0
        %1808 = vmatprep.subr.mxu0 0.0
        %1809 = vmatpush1.msra.mxu0 0.0
        %1810 = vmatprep.subr.mxu0 0.0
        %1811 = vmatpush1.msra.mxu0 0.0
        %1812 = vmatprep.subr.mxu0 0.0
        %1813 = vmatpush1.msra.mxu0 0.0
        %1814 = vmatprep.subr.mxu0 0.0
        %1815 = vmatpush1.msra.mxu0 0.0
        %1816 = vmatprep.subr.mxu0 0.0
        %1817 = vmatpush1.msra.mxu0 0.0
        %1818 = vmatprep.subr.mxu0 0.0
        %1819 = vmatpush1.msra.mxu0 0.0
        %1820 = vmatprep.subr.mxu0 0.0
        %1821 = vmatpush1.msra.mxu0 %v1215
        %1822 = vmatprep.subr.mxu0 0.0
        %1823 = vmatpush2.msra.mxu0 0.0
        %1824 = vmatprep.subr.mxu0 0.0
        %1825 = vmatpush2.msra.mxu0 0.0
        %1826 = vmatprep.subr.mxu0 0.0
        %1827 = vmatpush2.msra.mxu0 0.0
        %1828 = vmatprep.subr.mxu0 0.0
        %1829 = vmatpush2.msra.mxu0 0.0
        %1830 = vmatprep.subr.mxu0 0.0
        %1831 = vmatpush2.msra.mxu0 0.0
        %1832 = vmatprep.subr.mxu0 0.0
        %1833 = vmatpush2.msra.mxu0 0.0
        %1834 = vmatprep.subr.mxu0 0.0
        %1835 = vmatpush2.msra.mxu0 0.0
        %1836 = vmatprep.subr.mxu0 0.0
        %1837 = vmatpush2.msra.mxu0 0.0
        %1838 = vmatprep.subr.mxu0 0.0
        %1839 = vmatpush2.msra.mxu0 0.0
        %1840 = vmatprep.subr.mxu0 0.0
        %1841 = vmatpush2.msra.mxu0 0.0
        %1842 = vmatprep.subr.mxu0 0.0
        %1843 = vmatpush2.msra.mxu0 0.0
        %1844 = vmatprep.subr.mxu0 0.0
        %1845 = vmatpush2.msra.mxu0 0.0
        %1846 = vmatprep.subr.mxu0 0.0
        %1847 = vmatpush2.msra.mxu0 0.0
        %1848 = vmatprep.subr.mxu0 0.0
        %1849 = vmatpush2.msra.mxu0 0.0
        %1850 = vmatprep.subr.mxu0 0.0
        %1851 = vmatpush2.msra.mxu0 0.0
        %1852 = vmatprep.subr.mxu0 0.0
        %1853 = vmatpush2.msra.mxu0 0.0
        %1854 = vmatprep.mubr.f32.mxu0 0.0
        %1855 = vmatmul.mubr.f32.gmra.mxu0 %v1788
        %v1856 = vpop.f32.mrf.mxu0
        %v1857 = vadd.f32 0.0, %v1856
        %v1858 = vpop.f32.mrf.mxu0
        %1859 = vdwg.mxu0
        %v1861 = vsel %vm1288, %v1640, 0
        %1863 = vmatprep.subr.mxu0 0.0
        %1864 = vmatpush1.msra.mxu0 0.0
        %1865 = vmatprep.subr.mxu0 0.0
        %1866 = vmatpush1.msra.mxu0 0.0
        %1867 = vmatprep.subr.mxu0 0.0
        %1868 = vmatpush1.msra.mxu0 0.0
        %1869 = vmatprep.subr.mxu0 0.0
        %1870 = vmatpush1.msra.mxu0 0.0
        %1871 = vmatprep.subr.mxu0 0.0
        %1872 = vmatpush1.msra.mxu0 0.0
        %1873 = vmatprep.subr.mxu0 0.0
        %1874 = vmatpush1.msra.mxu0 0.0
        %1875 = vmatprep.subr.mxu0 0.0
        %1876 = vmatpush1.msra.mxu0 0.0
        %1877 = vmatprep.subr.mxu0 0.0
        %1878 = vmatpush1.msra.mxu0 0.0
        %1879 = vmatprep.subr.mxu0 0.0
        %1880 = vmatpush1.msra.mxu0 0.0
        %1881 = vmatprep.subr.mxu0 0.0
        %1882 = vmatpush1.msra.mxu0 0.0
        %1883 = vmatprep.subr.mxu0 0.0
        %1884 = vmatpush1.msra.mxu0 0.0
        %1885 = vmatprep.subr.mxu0 0.0
        %1886 = vmatpush1.msra.mxu0 0.0
        %1887 = vmatprep.subr.mxu0 0.0
        %1888 = vmatpush1.msra.mxu0 0.0
        %1889 = vmatprep.subr.mxu0 0.0
        %1890 = vmatpush1.msra.mxu0 0.0
        %1891 = vmatprep.subr.mxu0 0.0
        %1892 = vmatpush1.msra.mxu0 0.0
        %1893 = vmatprep.subr.mxu0 0.0
        %1894 = vmatpush1.msra.mxu0 %v1285
        %1895 = vmatprep.subr.mxu0 0.0
        %1896 = vmatpush2.msra.mxu0 0.0
        %1897 = vmatprep.subr.mxu0 0.0
        %1898 = vmatpush2.msra.mxu0 0.0
        %1899 = vmatprep.subr.mxu0 0.0
        %1900 = vmatpush2.msra.mxu0 0.0
        %1901 = vmatprep.subr.mxu0 0.0
        %1902 = vmatpush2.msra.mxu0 0.0
        %1903 = vmatprep.subr.mxu0 0.0
        %1904 = vmatpush2.msra.mxu0 0.0
        %1905 = vmatprep.subr.mxu0 0.0
        %1906 = vmatpush2.msra.mxu0 0.0
        %1907 = vmatprep.subr.mxu0 0.0
        %1908 = vmatpush2.msra.mxu0 0.0
        %1909 = vmatprep.subr.mxu0 0.0
        %1910 = vmatpush2.msra.mxu0 0.0
        %1911 = vmatprep.subr.mxu0 0.0
        %1912 = vmatpush2.msra.mxu0 0.0
        %1913 = vmatprep.subr.mxu0 0.0
        %1914 = vmatpush2.msra.mxu0 0.0
        %1915 = vmatprep.subr.mxu0 0.0
        %1916 = vmatpush2.msra.mxu0 0.0
        %1917 = vmatprep.subr.mxu0 0.0
        %1918 = vmatpush2.msra.mxu0 0.0
        %1919 = vmatprep.subr.mxu0 0.0
        %1920 = vmatpush2.msra.mxu0 0.0
        %1921 = vmatprep.subr.mxu0 0.0
        %1922 = vmatpush2.msra.mxu0 0.0
        %1923 = vmatprep.subr.mxu0 0.0
        %1924 = vmatpush2.msra.mxu0 0.0
        %1925 = vmatprep.subr.mxu0 0.0
        %1926 = vmatpush2.msra.mxu0 0.0
        %1927 = vmatprep.mubr.f32.mxu0 0.0
        %1928 = vmatmul.mubr.f32.gmra.mxu0 %v1861
        %v1929 = vpop.f32.mrf.mxu0
        %v1930 = vadd.f32 0.0, %v1929
        %v1931 = vpop.f32.mrf.mxu0
        %1932 = vdwg.mxu0
        %v1933 = vld [vmem:[%s6] sm:$0xff]
        %v1934 = vld [vmem:[%s6 + $0x8] sm:$0xff]
        %v1935 = vld [vmem:[%s6 + $0x10] sm:$0xff]
        %v1936 = vld [vmem:[%s6 + $0x18] sm:$0xff]
        %v1938 = vsel %vm1288, %v1711, 0
        %1940 = vmatprep.subr.mxu0 0.0
        %1941 = vmatpush1.msra.mxu0 0.0
        %1942 = vmatprep.subr.mxu0 0.0
        %1943 = vmatpush1.msra.mxu0 0.0
        %1944 = vmatprep.subr.mxu0 0.0
        %1945 = vmatpush1.msra.mxu0 0.0
        %1946 = vmatprep.subr.mxu0 0.0
        %1947 = vmatpush1.msra.mxu0 0.0
        %1948 = vmatprep.subr.mxu0 0.0
        %1949 = vmatpush1.msra.mxu0 0.0
        %1950 = vmatprep.subr.mxu0 0.0
        %1951 = vmatpush1.msra.mxu0 0.0
        %1952 = vmatprep.subr.mxu0 0.0
        %1953 = vmatpush1.msra.mxu0 0.0
        %1954 = vmatprep.subr.mxu0 0.0
        %1955 = vmatpush1.msra.mxu0 0.0
        %1956 = vmatprep.subr.mxu0 0.0
        %1957 = vmatpush1.msra.mxu0 0.0
        %1958 = vmatprep.subr.mxu0 0.0
        %1959 = vmatpush1.msra.mxu0 0.0
        %1960 = vmatprep.subr.mxu0 0.0
        %1961 = vmatpush1.msra.mxu0 0.0
        %1962 = vmatprep.subr.mxu0 0.0
        %1963 = vmatpush1.msra.mxu0 0.0
        %1964 = vmatprep.subr.mxu0 0.0
        %1965 = vmatpush1.msra.mxu0 0.0
        %1966 = vmatprep.subr.mxu0 0.0
        %1967 = vmatpush1.msra.mxu0 0.0
        %1968 = vmatprep.subr.mxu0 0.0
        %1969 = vmatpush1.msra.mxu0 0.0
        %1970 = vmatprep.subr.mxu0 0.0
        %1971 = vmatpush1.msra.mxu0 %v1933
        %1972 = vmatprep.subr.mxu0 0.0
        %1973 = vmatpush2.msra.mxu0 0.0
        %1974 = vmatprep.subr.mxu0 0.0
        %1975 = vmatpush2.msra.mxu0 0.0
        %1976 = vmatprep.subr.mxu0 0.0
        %1977 = vmatpush2.msra.mxu0 0.0
        %1978 = vmatprep.subr.mxu0 0.0
        %1979 = vmatpush2.msra.mxu0 0.0
        %1980 = vmatprep.subr.mxu0 0.0
        %1981 = vmatpush2.msra.mxu0 0.0
        %1982 = vmatprep.subr.mxu0 0.0
        %1983 = vmatpush2.msra.mxu0 0.0
        %1984 = vmatprep.subr.mxu0 0.0
        %1985 = vmatpush2.msra.mxu0 0.0
        %1986 = vmatprep.subr.mxu0 0.0
        %1987 = vmatpush2.msra.mxu0 0.0
        %1988 = vmatprep.subr.mxu0 0.0
        %1989 = vmatpush2.msra.mxu0 0.0
        %1990 = vmatprep.subr.mxu0 0.0
        %1991 = vmatpush2.msra.mxu0 0.0
        %1992 = vmatprep.subr.mxu0 0.0
        %1993 = vmatpush2.msra.mxu0 0.0
        %1994 = vmatprep.subr.mxu0 0.0
        %1995 = vmatpush2.msra.mxu0 0.0
        %1996 = vmatprep.subr.mxu0 0.0
        %1997 = vmatpush2.msra.mxu0 0.0
        %1998 = vmatprep.subr.mxu0 0.0
        %1999 = vmatpush2.msra.mxu0 0.0
        %2000 = vmatprep.subr.mxu0 0.0
        %2001 = vmatpush2.msra.mxu0 0.0
        %2002 = vmatprep.subr.mxu0 0.0
        %2003 = vmatpush2.msra.mxu0 0.0
        %2004 = vmatprep.mubr.f32.mxu0 0.0
        %2005 = vmatmul.mubr.f32.gmra.mxu0 %v1938
        %v2006 = vpop.f32.mrf.mxu0
        %v2007 = vadd.f32 0.0, %v2006
        %v2008 = vpop.f32.mrf.mxu0
        %2009 = vdwg.mxu0
        %v2011 = vsel %vm1288, %v1784, 0
        %2013 = vmatprep.subr.mxu0 0.0
        %2014 = vmatpush1.msra.mxu0 0.0
        %2015 = vmatprep.subr.mxu0 0.0
        %2016 = vmatpush1.msra.mxu0 0.0
        %2017 = vmatprep.subr.mxu0 0.0
        %2018 = vmatpush1.msra.mxu0 0.0
        %2019 = vmatprep.subr.mxu0 0.0
        %2020 = vmatpush1.msra.mxu0 0.0
        %2021 = vmatprep.subr.mxu0 0.0
        %2022 = vmatpush1.msra.mxu0 0.0
        %2023 = vmatprep.subr.mxu0 0.0
        %2024 = vmatpush1.msra.mxu0 0.0
        %2025 = vmatprep.subr.mxu0 0.0
        %2026 = vmatpush1.msra.mxu0 0.0
        %2027 = vmatprep.subr.mxu0 0.0
        %2028 = vmatpush1.msra.mxu0 0.0
        %2029 = vmatprep.subr.mxu0 0.0
        %2030 = vmatpush1.msra.mxu0 0.0
        %2031 = vmatprep.subr.mxu0 0.0
        %2032 = vmatpush1.msra.mxu0 0.0
        %2033 = vmatprep.subr.mxu0 0.0
        %2034 = vmatpush1.msra.mxu0 0.0
        %2035 = vmatprep.subr.mxu0 0.0
        %2036 = vmatpush1.msra.mxu0 0.0
        %2037 = vmatprep.subr.mxu0 0.0
        %2038 = vmatpush1.msra.mxu0 0.0
        %2039 = vmatprep.subr.mxu0 0.0
        %2040 = vmatpush1.msra.mxu0 0.0
        %2041 = vmatprep.subr.mxu0 0.0
        %2042 = vmatpush1.msra.mxu0 0.0
        %2043 = vmatprep.subr.mxu0 0.0
        %2044 = vmatpush1.msra.mxu0 %v1934
        %2045 = vmatprep.subr.mxu0 0.0
        %2046 = vmatpush2.msra.mxu0 0.0
        %2047 = vmatprep.subr.mxu0 0.0
        %2048 = vmatpush2.msra.mxu0 0.0
        %2049 = vmatprep.subr.mxu0 0.0
        %2050 = vmatpush2.msra.mxu0 0.0
        %2051 = vmatprep.subr.mxu0 0.0
        %2052 = vmatpush2.msra.mxu0 0.0
        %2053 = vmatprep.subr.mxu0 0.0
        %2054 = vmatpush2.msra.mxu0 0.0
        %2055 = vmatprep.subr.mxu0 0.0
        %2056 = vmatpush2.msra.mxu0 0.0
        %2057 = vmatprep.subr.mxu0 0.0
        %2058 = vmatpush2.msra.mxu0 0.0
        %2059 = vmatprep.subr.mxu0 0.0
        %2060 = vmatpush2.msra.mxu0 0.0
        %2061 = vmatprep.subr.mxu0 0.0
        %2062 = vmatpush2.msra.mxu0 0.0
        %2063 = vmatprep.subr.mxu0 0.0
        %2064 = vmatpush2.msra.mxu0 0.0
        %2065 = vmatprep.subr.mxu0 0.0
        %2066 = vmatpush2.msra.mxu0 0.0
        %2067 = vmatprep.subr.mxu0 0.0
        %2068 = vmatpush2.msra.mxu0 0.0
        %2069 = vmatprep.subr.mxu0 0.0
        %2070 = vmatpush2.msra.mxu0 0.0
        %2071 = vmatprep.subr.mxu0 0.0
        %2072 = vmatpush2.msra.mxu0 0.0
        %2073 = vmatprep.subr.mxu0 0.0
        %2074 = vmatpush2.msra.mxu0 0.0
        %2075 = vmatprep.subr.mxu0 0.0
        %2076 = vmatpush2.msra.mxu0 0.0
        %2077 = vmatprep.mubr.f32.mxu0 0.0
        %2078 = vmatmul.mubr.f32.gmra.mxu0 %v2011
        %v2079 = vpop.f32.mrf.mxu0
        %v2080 = vadd.f32 0.0, %v2079
        %v2081 = vpop.f32.mrf.mxu0
        %2082 = vdwg.mxu0
        %v2084 = vsel %vm1288, %v1857, 0
        %2086 = vmatprep.subr.mxu0 0.0
        %2087 = vmatpush1.msra.mxu0 0.0
        %2088 = vmatprep.subr.mxu0 0.0
        %2089 = vmatpush1.msra.mxu0 0.0
        %2090 = vmatprep.subr.mxu0 0.0
        %2091 = vmatpush1.msra.mxu0 0.0
        %2092 = vmatprep.subr.mxu0 0.0
        %2093 = vmatpush1.msra.mxu0 0.0
        %2094 = vmatprep.subr.mxu0 0.0
        %2095 = vmatpush1.msra.mxu0 0.0
        %2096 = vmatprep.subr.mxu0 0.0
        %2097 = vmatpush1.msra.mxu0 0.0
        %2098 = vmatprep.subr.mxu0 0.0
        %2099 = vmatpush1.msra.mxu0 0.0
        %2100 = vmatprep.subr.mxu0 0.0
        %2101 = vmatpush1.msra.mxu0 0.0
        %2102 = vmatprep.subr.mxu0 0.0
        %2103 = vmatpush1.msra.mxu0 0.0
        %2104 = vmatprep.subr.mxu0 0.0
        %2105 = vmatpush1.msra.mxu0 0.0
        %2106 = vmatprep.subr.mxu0 0.0
        %2107 = vmatpush1.msra.mxu0 0.0
        %2108 = vmatprep.subr.mxu0 0.0
        %2109 = vmatpush1.msra.mxu0 0.0
        %2110 = vmatprep.subr.mxu0 0.0
        %2111 = vmatpush1.msra.mxu0 0.0
        %2112 = vmatprep.subr.mxu0 0.0
        %2113 = vmatpush1.msra.mxu0 0.0
        %2114 = vmatprep.subr.mxu0 0.0
        %2115 = vmatpush1.msra.mxu0 0.0
        %2116 = vmatprep.subr.mxu0 0.0
        %2117 = vmatpush1.msra.mxu0 %v1935
        %2118 = vmatprep.subr.mxu0 0.0
        %2119 = vmatpush2.msra.mxu0 0.0
        %2120 = vmatprep.subr.mxu0 0.0
        %2121 = vmatpush2.msra.mxu0 0.0
        %2122 = vmatprep.subr.mxu0 0.0
        %2123 = vmatpush2.msra.mxu0 0.0
        %2124 = vmatprep.subr.mxu0 0.0
        %2125 = vmatpush2.msra.mxu0 0.0
        %2126 = vmatprep.subr.mxu0 0.0
        %2127 = vmatpush2.msra.mxu0 0.0
        %2128 = vmatprep.subr.mxu0 0.0
        %2129 = vmatpush2.msra.mxu0 0.0
        %2130 = vmatprep.subr.mxu0 0.0
        %2131 = vmatpush2.msra.mxu0 0.0
        %2132 = vmatprep.subr.mxu0 0.0
        %2133 = vmatpush2.msra.mxu0 0.0
        %2134 = vmatprep.subr.mxu0 0.0
        %2135 = vmatpush2.msra.mxu0 0.0
        %2136 = vmatprep.subr.mxu0 0.0
        %2137 = vmatpush2.msra.mxu0 0.0
        %2138 = vmatprep.subr.mxu0 0.0
        %2139 = vmatpush2.msra.mxu0 0.0
        %2140 = vmatprep.subr.mxu0 0.0
        %2141 = vmatpush2.msra.mxu0 0.0
        %2142 = vmatprep.subr.mxu0 0.0
        %2143 = vmatpush2.msra.mxu0 0.0
        %2144 = vmatprep.subr.mxu0 0.0
        %2145 = vmatpush2.msra.mxu0 0.0
        %2146 = vmatprep.subr.mxu0 0.0
        %2147 = vmatpush2.msra.mxu0 0.0
        %2148 = vmatprep.subr.mxu0 0.0
        %2149 = vmatpush2.msra.mxu0 0.0
        %2150 = vmatprep.mubr.f32.mxu0 0.0
        %2151 = vmatmul.mubr.f32.gmra.mxu0 %v2084
        %v2152 = vpop.f32.mrf.mxu0
        %v2153 = vadd.f32 0.0, %v2152
        %v2154 = vpop.f32.mrf.mxu0
        %2155 = vdwg.mxu0
        %v2157 = vsel %vm1288, %v1930, 0
        %2159 = vmatprep.subr.mxu0 0.0
        %2160 = vmatpush1.msra.mxu0 0.0
        %2161 = vmatprep.subr.mxu0 0.0
        %2162 = vmatpush1.msra.mxu0 0.0
        %2163 = vmatprep.subr.mxu0 0.0
        %2164 = vmatpush1.msra.mxu0 0.0
        %2165 = vmatprep.subr.mxu0 0.0
        %2166 = vmatpush1.msra.mxu0 0.0
        %2167 = vmatprep.subr.mxu0 0.0
        %2168 = vmatpush1.msra.mxu0 0.0
        %2169 = vmatprep.subr.mxu0 0.0
        %2170 = vmatpush1.msra.mxu0 0.0
        %2171 = vmatprep.subr.mxu0 0.0
        %2172 = vmatpush1.msra.mxu0 0.0
        %2173 = vmatprep.subr.mxu0 0.0
        %2174 = vmatpush1.msra.mxu0 0.0
        %2175 = vmatprep.subr.mxu0 0.0
        %2176 = vmatpush1.msra.mxu0 0.0
        %2177 = vmatprep.subr.mxu0 0.0
        %2178 = vmatpush1.msra.mxu0 0.0
        %2179 = vmatprep.subr.mxu0 0.0
        %2180 = vmatpush1.msra.mxu0 0.0
        %2181 = vmatprep.subr.mxu0 0.0
        %2182 = vmatpush1.msra.mxu0 0.0
        %2183 = vmatprep.subr.mxu0 0.0
        %2184 = vmatpush1.msra.mxu0 0.0
        %2185 = vmatprep.subr.mxu0 0.0
        %2186 = vmatpush1.msra.mxu0 0.0
        %2187 = vmatprep.subr.mxu0 0.0
        %2188 = vmatpush1.msra.mxu0 0.0
        %2189 = vmatprep.subr.mxu0 0.0
        %2190 = vmatpush1.msra.mxu0 %v1936
        %2191 = vmatprep.subr.mxu0 0.0
        %2192 = vmatpush2.msra.mxu0 0.0
        %2193 = vmatprep.subr.mxu0 0.0
        %2194 = vmatpush2.msra.mxu0 0.0
        %2195 = vmatprep.subr.mxu0 0.0
        %2196 = vmatpush2.msra.mxu0 0.0
        %2197 = vmatprep.subr.mxu0 0.0
        %2198 = vmatpush2.msra.mxu0 0.0
        %2199 = vmatprep.subr.mxu0 0.0
        %2200 = vmatpush2.msra.mxu0 0.0
        %2201 = vmatprep.subr.mxu0 0.0
        %2202 = vmatpush2.msra.mxu0 0.0
        %2203 = vmatprep.subr.mxu0 0.0
        %2204 = vmatpush2.msra.mxu0 0.0
        %2205 = vmatprep.subr.mxu0 0.0
        %2206 = vmatpush2.msra.mxu0 0.0
        %2207 = vmatprep.subr.mxu0 0.0
        %2208 = vmatpush2.msra.mxu0 0.0
        %2209 = vmatprep.subr.mxu0 0.0
        %2210 = vmatpush2.msra.mxu0 0.0
        %2211 = vmatprep.subr.mxu0 0.0
        %2212 = vmatpush2.msra.mxu0 0.0
        %2213 = vmatprep.subr.mxu0 0.0
        %2214 = vmatpush2.msra.mxu0 0.0
        %2215 = vmatprep.subr.mxu0 0.0
        %2216 = vmatpush2.msra.mxu0 0.0
        %2217 = vmatprep.subr.mxu0 0.0
        %2218 = vmatpush2.msra.mxu0 0.0
        %2219 = vmatprep.subr.mxu0 0.0
        %2220 = vmatpush2.msra.mxu0 0.0
        %2221 = vmatprep.subr.mxu0 0.0
        %2222 = vmatpush2.msra.mxu0 0.0
        %2223 = vmatprep.mubr.f32.mxu0 0.0
        %2224 = vmatmul.mubr.f32.gmra.mxu0 %v2157
        %v2225 = vpop.f32.mrf.mxu0
        %v2226 = vadd.f32 0.0, %v2225
        %v2227 = vpop.f32.mrf.mxu0
        %2228 = vdwg.mxu0
        %v2229 = vsel %vm406, %v2007, 0.0
        %v2230 = vsel %vm406, %v2080, 0.0
        %v2231 = vadd.f32 %v2229, %v2230
        %v2232 = vsel %vm406, %v2153, 0.0
        %v2233 = vadd.f32 %v2231, %v2232
        %v2234 = vsel %vm406, %v2226, 0.0
        %v2235 = vadd.f32 %v2233, %v2234
        %v2236 = vadd.f32 %v2235, %v387
        %v2237 = vsel %vm406, %v2236, 0.0
        %2238 = vadd.xlane.f32.xlu0 %v2237
        %v2239 = vpop.xlane.xlu0 %2238
        %v2240 = vrcp.pop 32.0
        %v2241 = vmul.f32 %v2239, %v2240
        %v2242 = vmul.f32 %v2236, %v2236
        %v2243 = vsel %vm406, %v2242, 0.0
        %2244 = vadd.xlane.f32.xlu0 %v2243
        %v2245 = vpop.xlane.xlu0 %2244
        %v2246 = vmul.f32 %v2245, %v2240
        %v2247 = vmul.f32 %v2241, %v2241
        %v2248 = vsub.f32 %v2246, %v2247
        %v2249 = vsub.f32 %v2236, %v2241
        %v2250 = vadd.f32 %v2248, 1e-06
        %v2251 = vrsqrt.pop %v2250
        %v2252 = vmul.f32 %v2249, %v2251
        %v2253 = vld [vmem:[%s7] sm:$0x1]
        %v2255 = vlaneseq
        %v2256 = vshrl.u32 %v2255, 7
        %v2257 = vsub.s32 0, %v2256
        %v2258 = vrot.slane %v2253, %v2257
        %v2260 = vmul.f32 %v2252, %v2258
        %v2261 = vld [vmem:[%s8] sm:$0x1]
        %v2263 = vlaneseq
        %v2264 = vshrl.u32 %v2263, 7
        %v2265 = vsub.s32 0, %v2264
        %v2266 = vrot.slane %v2261, %v2265
        %v2268 = vadd.f32 %v2260, %v2266
        %2269 = vst.msk [vmem:[%s371] sm:$0xff] %vm406, %v2268
        %s2270 = sand.u32 %s251, 1
        %s2271 = scalar_lea.sflag [#allocation3], %s2270
        %s2272 = sand.u32 %s251, 1
        %s2273 = smul.addr %s2272, 8
        %s2274 = scalar_lea.vmem [#allocation2], %s2273
        // Predicated region
        $region57: #{tpu_custom_call.1} parent=55 // pred_check
          %p2275 = pneg %p261
        $region58: #{tpu_custom_call.1} parent=55 // pred_check_branch
          %2277 = sbr.rel (%p2275) target = $region60
        $region59: #{tpu_custom_call.1} parent=55 // pred_region
          %s2279 = ssub.s32 128, 128
          %2280 = vsyncadd %s2271, %s2279
          %s2281 = sadd.s32 %s28, %s27
          %s2282 = smul.addr %s2281, 128
          %s2283 = scalar_lea.hbm %s9, %s2282
          %s2285 = sshll.u32 %s2274, 4
          %s2286 = int_to_ptr.vmem [resolvable:$true] %s2285
          %2288 = dma.vmem_to_hbm [thread:$0]  %s2286, 128, %s2283, %s2271
        $region60: #{tpu_custom_call.1} parent=55 // pred_fallthru
          _
      $region56: #{tpu_custom_call.1} parent=5 // pred_fallthru
        _
      %p2289 = scmp.le.s32.totalorder 2, %s18
      // Predicated region
      $region61: #{tpu_custom_call.1} parent=5 // pred_check
        %p2290 = pneg %p2289
      $region62: #{tpu_custom_call.1} parent=5 // pred_check_branch
        %2292 = sbr.rel (%p2290) target = $region64
      $region63: #{tpu_custom_call.1} parent=5 // pred_region
        %s2293 = ssub.s32 %s18, 2
        // Predicated region
        $region65: #{tpu_custom_call.1} parent=63 // pred_check
          %p2294 = pneg %p267
        $region66: #{tpu_custom_call.1} parent=63 // pred_check_branch
          %2296 = sbr.rel (%p2294) target = $region68
        $region67: #{tpu_custom_call.1} parent=63 // pred_region
          %s2297 = sand.u32 %s252, 1
          %s2298 = scalar_lea.sflag [#allocation3], %s2297
          %s2299 = sand.u32 %s252, 1
          %s2300 = smul.addr %s2299, 8
          %s2301 = scalar_lea.vmem [#allocation2], %s2300
          %2302 = dma.done %s2298, 128
        $region68: #{tpu_custom_call.1} parent=63 // pred_fallthru
          _
      $region64: #{tpu_custom_call.1} parent=5 // pred_fallthru
        _
    $region6: #{tpu_custom_call.1} parent=1 // loop_footer
      %s22 = sadd.s32 1, %s18
    $region7: #{tpu_custom_call.1} parent=1 // loop_footer_branch
      %17 = sbr.rel target = $region3
    $region8: #{tpu_custom_call.1} parent=1 // loop_exit
      _
    %2303 = vsyncpa [#allocation3], 1
    %s2304 = scalar_lea.sflag [#allocation3], 1
    %2305 = vsyncpa %s2304, 1

</llo_original>
